<compile_context>
chip_gen: v5e
topology: v5e:2x2
jax: 0.10.0
libtpu: 0.0.40
codegen_flags: <defaults>
</compile_context>

<pallas_src>
import math
import functools

import jax
import jax.numpy as jnp
from jax import lax
from jax.experimental import pallas as pl
from jax.experimental.pallas import tpu as pltpu

# ----------------------------- config -------------------------------------
EMB = 32            # embedding_size
HID = 32            # hidden_size (== embedding_size; required by mlp/att dims)
N_INTEREST = 4      # n_interest
N_ITEMS = 50        # n_item
TEMP = 0.1          # temp
B = 2               # batch
SEQ = 8             # sequence length

_EPS = 1e-12
_EPS2 = _EPS * _EPS
_LANE = 128         # per-gate lane block in the packed GRU weights (HID <= 128)


def _l2norm(x, eps=_EPS):
    # matches torch F.normalize(p=2): x / max(||x||, eps)
    n = jnp.sqrt(jnp.sum(x * x, axis=-1, keepdims=True))
    return x / jnp.maximum(n, eps)


# -------------------------- fused Pallas kernel -----------------------------
def devcl_fused_kernel(seq_tm_ref, seq_bm_ref, lens_ref, lens_rep_ref,
                       idk_ref, ikd_ref, wih_ref, whh_ref, wm_ref, bm_ref,
                       psnl_ref, imp_ref, *, temp):
    """Fused DevCL eval forward.

    seq_tm_ref  : (S*B, D) time-major normalized item embeddings (row t*B+b)
    seq_bm_ref  : (B*S, D) batch-major normalized item embeddings (row b*S+t)
    lens_ref    : (B, 1)   item_seq_len (int32)
    lens_rep_ref: (B*S, 1) item_seq_len broadcast per batch-major row (int32)
    idk_ref     : (D, K)   normalized system interests, pre-transposed
    ikd_ref     : (K, D)   normalized system interests (fallback rows)
    wih_ref     : (D, 3*128)  W_ih^T gate-packed (r,z,n in lane blocks 0/128/256)
    whh_ref     : (H, 3*128)  W_hh^T gate-packed
    wm_ref      : (H, H)   MLP W^T
    bm_ref      : (1, H)   MLP bias
    psnl_ref    : (B, K*D) output: personal interests, lane-dense
    imp_ref     : (B, K)   output: imp_probs (interest_mask)
    """
    batch = lens_ref.shape[0]
    n_tot, dim = seq_bm_ref.shape
    seq = n_tot // batch
    n_int = idk_ref.shape[1]
    hid = wm_ref.shape[0]
    inv_temp = 1.0 / temp

    # ---- hoisted GRU input projection: ONE matmul, gates in 128-lane blocks --
    gi_all = jnp.dot(seq_tm_ref[...], wih_ref[...],
                     preferred_element_type=jnp.float32)            # (S*B, 3*128)

    whh = whh_ref[...]                                              # (H, 3*128)
    len_m1 = lens_ref[...] - 1                                      # (B, 1)

    # ---- GRU recurrence (PyTorch gate order r,z,n; bias=False), unrolled -----
    # one fused (B,H)@(H,3*128) matmul per step; per-t gi is a static value slice
    h = jnp.zeros((batch, hid), jnp.float32)
    h_sel = h
    for t in range(seq):
        gi_t = gi_all[t * batch:(t + 1) * batch, :]                 # (B, 3*128)
        gh = jnp.dot(h, whh, preferred_element_type=jnp.float32)    # (B, 3*128)
        r = jax.nn.sigmoid(gi_t[:, 0:hid] + gh[:, 0:hid])
        z = jax.nn.sigmoid(gi_t[:, _LANE:_LANE + hid] + gh[:, _LANE:_LANE + hid])
        n = jnp.tanh(gi_t[:, 2 * _LANE:2 * _LANE + hid]
                     + r * gh[:, 2 * _LANE:2 * _LANE + hid])
        h = (1.0 - z) * n + z * h
        h_sel = jnp.where(len_m1 == t, h, h_sel)                    # keep h at len-1

    # ---- MLP head + ReLU + L2 normalize, only on the gathered last states ----
    full = jax.nn.relu(
        jnp.dot(h_sel, wm_ref[...], preferred_element_type=jnp.float32)
        + bm_ref[...])                                              # (B, H)
    full = full * lax.rsqrt(
        jnp.maximum(jnp.sum(full * full, axis=-1, keepdims=True), _EPS2))

    # ---- soft interest assignment (batch-major rows); exact softmax ----------
    # NOTE: exact divide used for BOTH softmaxes (consistent with PyTorch).
    e_bm = seq_bm_ref[...]                                          # (B*S, D)
    scores = jnp.dot(e_bm, idk_ref[...],
                     preferred_element_type=jnp.float32) * inv_temp  # (B*S, K)
    smax = jnp.max(scores, axis=-1, keepdims=True)
    exs = jnp.exp(scores - smax)
    probs = exs / jnp.sum(exs, axis=-1, keepdims=True)

    # padding mask computed in-kernel: row b*S+t is valid iff t < len[b]
    t_of_row = lax.broadcasted_iota(jnp.int32, (n_tot, 1), 0) % seq
    probs = probs * (t_of_row < lens_rep_ref[...]).astype(jnp.float32)

    it = ikd_ref[...]                                               # (K, D)
    psnl_rows = []
    for b in range(batch):
        p_b = probs[b * seq:(b + 1) * seq, :]                       # (S, K)
        e_b = e_bm[b * seq:(b + 1) * seq, :]                        # (S, D)
        agg = jnp.einsum("sk,sd->kd", p_b, e_b,
                         preferred_element_type=jnp.float32)        # (K, D)
        agg = agg * lax.rsqrt(
            jnp.maximum(jnp.sum(agg * agg, axis=-1, keepdims=True), _EPS2))
        im_b = jnp.sum(p_b, axis=0)[:, None]                        # (K, 1)
        psnl_b = jnp.where(im_b > 0.0, agg, it)                     # sys-interest fallback
        # flatten (K, D) -> (1, K*D) lane-dense row
        psnl_rows.append(jnp.concatenate(
            [psnl_b[kk:kk + 1, :] for kk in range(n_int)], axis=1))
    psnl_flat = jnp.concatenate(psnl_rows, axis=0)                  # (B, K*D)
    psnl_ref[...] = psnl_flat                                       # single store

    # ---- imp_probs = softmax(full . psnl / temp), lane-blockwise (no xpose) --
    full_rep = jnp.concatenate([full] * n_int, axis=1)              # (B, K*D)
    prod = psnl_flat * full_rep
    lg = jnp.concatenate(
        [jnp.sum(prod[:, kk * dim:(kk + 1) * dim], axis=-1, keepdims=True)
         for kk in range(n_int)], axis=1) * inv_temp                # (B, K)
    lmax = jnp.max(lg, axis=-1, keepdims=True)
    ex2 = jnp.exp(lg - lmax)
    imp_ref[...] = ex2 / jnp.sum(ex2, axis=-1, keepdims=True)       # single store


# ----------------------------- wrapper ---------------------------------------
def devcl_forward(params, item_seq, item_seq_len):
    """Eval forward of DevCL. Returns (psnl_interest [B,K,D], imp_probs [B,K])."""
    b, s = item_seq.shape
    d = params["item_emb"].shape[1]
    k = params["interest_emb"].shape[0]
    h = params["mlp_w"].shape[0]

    # in-forward weight normalization (torch no_grad copy_)
    item_emb_w = _l2norm(params["item_emb"])          # padding row stays zero
    interest_w = _l2norm(params["interest_emb"])

    # embedding lookup; emb_dropout is identity in eval
    # TODO(synk): the row gather itself stays in XLA (a dynamic sublane gather
    # of a 50-row table inside the kernel has no clean/robust Mosaic mapping).
    seq_emb = item_emb_w[item_seq]                                   # (B, S, D)
    seq_bm = seq_emb.reshape(b * s, d)                               # batch-major rows
    seq_tm = jnp.transpose(seq_emb, (1, 0, 2)).reshape(s * b, d)     # time-major rows

    lens_col = item_seq_len.astype(jnp.int32)[:, None]               # (B, 1)
    lens_rep = jnp.repeat(lens_col, s, axis=0)                       # (B*S, 1)

    int_kd = interest_w                                              # (K, D)
    int_dk = interest_w.T                                            # (D, K) pre-xposed

    # GRU weights (PyTorch layout (3H, in), gate order r,z,n): pack each gate's
    # transposed weight into its own 128-lane block -> one fused matmul per step,
    # gates sliced at 128-aligned lane offsets inside the kernel.
    def pack_gates(w, in_dim):
        packed = jnp.zeros((in_dim, 3 * _LANE), jnp.float32)
        for g in range(3):
            packed = packed.at[:, g * _LANE:g * _LANE + h].set(
                w[g * h:(g + 1) * h, :].T)
        return packed

    wih_p = pack_gates(params["gru_w_ih"], d)                        # (D, 3*128)
    whh_p = pack_gates(params["gru_w_hh"], h)                        # (H, 3*128)

    wm_t = params["mlp_w"].T                                         # (H, H)
    bm = params["mlp_b"][None, :]                                    # (1, H)

    vmem = pl.BlockSpec(memory_space=pltpu.MemorySpace.VMEM)
    psnl_flat, imp_probs = pl.pallas_call(
        functools.partial(devcl_fused_kernel, temp=TEMP),
        in_specs=[vmem] * 10,
        out_specs=(vmem, vmem),
        out_shape=(jax.ShapeDtypeStruct((b, k * d), jnp.float32),    # lane-dense slab
                   jax.ShapeDtypeStruct((b, k), jnp.float32)),
    )(seq_tm, seq_bm, lens_col, lens_rep, int_dk, int_kd, wih_p, whh_p, wm_t, bm)

    psnl_interest = psnl_flat.reshape(b, k, d)
    # interest_type has no Agg/Double/Plus/Extra -> return as-is
    return psnl_interest, imp_probs


# ------------------------- parameter init -----------------------------------
def init_params(key):
    # DevCL.init_parameter: every weight ~ U(-stdv, stdv), stdv = 1/sqrt(hidden)
    # (the 'interest_embedding' orthogonal branch never fires: param names carry
    #  a '.weight' suffix in PyTorch, so all weights are uniform).
    stdv = 1.0 / math.sqrt(HID)
    ks = jax.random.split(key, 6)
    uni = lambda kk, shape: jax.random.uniform(kk, shape, jnp.float32, -stdv, stdv)
    item_emb = uni(ks[0], (N_ITEMS, EMB)).at[0].set(0.0)   # padding_idx=0
    return {
        "item_emb": item_emb,
        "interest_emb": uni(ks[1], (N_INTEREST, EMB)),
        "gru_w_ih": uni(ks[2], (3 * HID, EMB)),            # bias=False, num_layers=1
        "gru_w_hh": uni(ks[3], (3 * HID, HID)),
        "mlp_w": uni(ks[4], (EMB, EMB)),
        "mlp_b": uni(ks[5], (EMB,)),
    }
    # TODO(synk): the agg_type=='hard' + add_gru branch (pack_padded_sequence of
    # per-interest variable-length sub-sequences) is data-dependent ragged work
    # with no clean static Pallas mapping; config here uses agg_type='soft'.


# ------------------------------- main ----------------------------------------
if __name__ == "__main__":
    root = jax.random.PRNGKey(0)
    k_params, k_seq = jax.random.split(root)

    params = init_params(k_params)

    # deterministic small inputs: padded item sequences + true lengths
    item_seq = jax.random.randint(k_seq, (B, SEQ), 1, N_ITEMS, dtype=jnp.int32)
    item_seq_len = jnp.array([5, 8], dtype=jnp.int32)
    pos = jnp.arange(SEQ, dtype=jnp.int32)[None, :]
    item_seq = jnp.where(pos < item_seq_len[:, None], item_seq, 0)

    psnl_interest, interest_mask = jax.jit(devcl_forward)(
        params, item_seq, item_seq_len)
    jax.block_until_ready((psnl_interest, interest_mask))

    assert psnl_interest.shape == (B, N_INTEREST, EMB)
    assert interest_mask.shape == (B, N_INTEREST)
    print("KERNEL_OK")
</pallas_src>

<mosaic_0001>
module attributes {stable_mosaic.version = 11 : i64} {
  func.func @devcl_fused_kernel(%arg0: memref<16x32xf32, #tpu.memory_space<vmem>>, %arg1: memref<16x32xf32, #tpu.memory_space<vmem>>, %arg2: memref<2x1xi32, #tpu.memory_space<vmem>>, %arg3: memref<16x1xi32, #tpu.memory_space<vmem>>, %arg4: memref<32x4xf32, #tpu.memory_space<vmem>>, %arg5: memref<4x32xf32, #tpu.memory_space<vmem>>, %arg6: memref<32x384xf32, #tpu.memory_space<vmem>>, %arg7: memref<32x384xf32, #tpu.memory_space<vmem>>, %arg8: memref<32x32xf32, #tpu.memory_space<vmem>>, %arg9: memref<1x32xf32, #tpu.memory_space<vmem>>, %arg10: memref<2x128xf32, #tpu.memory_space<vmem>>, %arg11: memref<2x4xf32, #tpu.memory_space<vmem>>) attributes {dimension_semantics = [], scalar_prefetch = 0 : i64, scratch_operands = 0 : i64, tpu.core_type = #tpu.core_type<tc>} {
    %c0 = arith.constant 0 : index
    %c0_0 = arith.constant 0 : index
    %0 = vector.load %arg0[%c0, %c0_0] : memref<16x32xf32, #tpu.memory_space<vmem>>, vector<16x32xf32>
    %c0_1 = arith.constant 0 : index
    %c0_2 = arith.constant 0 : index
    %1 = vector.load %arg6[%c0_1, %c0_2] : memref<32x384xf32, #tpu.memory_space<vmem>>, vector<32x384xf32>
    %cst = arith.constant dense<0.000000e+00> : vector<16x384xf32>
    %2 = tpu.matmul %0, %1, %cst {dimension_numbers = #tpu.dot_dimension_numbers<[1], [0], [0], [1], [0, 0, 1, 1], [], []>} : vector<16x32xf32>, vector<32x384xf32>, vector<16x384xf32> -> vector<16x384xf32>
    %c0_3 = arith.constant 0 : index
    %c0_4 = arith.constant 0 : index
    %3 = vector.load %arg7[%c0_3, %c0_4] : memref<32x384xf32, #tpu.memory_space<vmem>>, vector<32x384xf32>
    %c0_5 = arith.constant 0 : index
    %c0_6 = arith.constant 0 : index
    %4 = vector.load %arg2[%c0_5, %c0_6] : memref<2x1xi32, #tpu.memory_space<vmem>>, vector<2x1xi32>
    %c1_i32 = arith.constant 1 : i32
    %5 = vector.broadcast %c1_i32 : i32 to vector<2x1xi32>
    %6 = arith.subi %4, %5 : vector<2x1xi32>
    %cst_7 = arith.constant 0.000000e+00 : f32
    %7 = vector.broadcast %cst_7 : f32 to vector<2x32xf32>
    %8 = vector.extract_strided_slice %2 {offsets = [0, 0], sizes = [2, 384], strides = [1, 1]} : vector<16x384xf32> to vector<2x384xf32>
    %cst_8 = arith.constant dense<0.000000e+00> : vector<2x384xf32>
    %9 = tpu.matmul %7, %3, %cst_8 {dimension_numbers = #tpu.dot_dimension_numbers<[1], [0], [0], [1], [0, 0, 1, 1], [], []>} : vector<2x32xf32>, vector<32x384xf32>, vector<2x384xf32> -> vector<2x384xf32>
    %10 = vector.extract_strided_slice %8 {offsets = [0, 0], sizes = [2, 32], strides = [1, 1]} : vector<2x384xf32> to vector<2x32xf32>
    %11 = vector.extract_strided_slice %9 {offsets = [0, 0], sizes = [2, 32], strides = [1, 1]} : vector<2x384xf32> to vector<2x32xf32>
    %12 = arith.addf %10, %11 : vector<2x32xf32>
    %13 = arith.negf %12 : vector<2x32xf32>
    %14 = math.exp %13 : vector<2x32xf32>
    %cst_9 = arith.constant 1.000000e+00 : f32
    %15 = vector.broadcast %cst_9 : f32 to vector<2x32xf32>
    %16 = arith.addf %15, %14 : vector<2x32xf32>
    %17 = arith.divf %15, %16 : vector<2x32xf32>
    %18 = vector.extract_strided_slice %8 {offsets = [0, 128], sizes = [2, 32], strides = [1, 1]} : vector<2x384xf32> to vector<2x32xf32>
    %19 = vector.extract_strided_slice %9 {offsets = [0, 128], sizes = [2, 32], strides = [1, 1]} : vector<2x384xf32> to vector<2x32xf32>
    %20 = arith.addf %18, %19 : vector<2x32xf32>
    %21 = arith.negf %20 : vector<2x32xf32>
    %22 = math.exp %21 : vector<2x32xf32>
    %cst_10 = arith.constant 1.000000e+00 : f32
    %23 = vector.broadcast %cst_10 : f32 to vector<2x32xf32>
    %24 = arith.addf %23, %22 : vector<2x32xf32>
    %25 = arith.divf %23, %24 : vector<2x32xf32>
    %26 = vector.extract_strided_slice %8 {offsets = [0, 256], sizes = [2, 32], strides = [1, 1]} : vector<2x384xf32> to vector<2x32xf32>
    %27 = vector.extract_strided_slice %9 {offsets = [0, 256], sizes = [2, 32], strides = [1, 1]} : vector<2x384xf32> to vector<2x32xf32>
    %28 = arith.mulf %17, %27 : vector<2x32xf32>
    %29 = arith.addf %26, %28 : vector<2x32xf32>
    %30 = math.tanh %29 : vector<2x32xf32>
    %cst_11 = arith.constant 1.000000e+00 : f32
    %31 = vector.broadcast %cst_11 : f32 to vector<2x32xf32>
    %32 = arith.subf %31, %25 : vector<2x32xf32>
    %33 = arith.mulf %32, %30 : vector<2x32xf32>
    %34 = arith.mulf %25, %7 : vector<2x32xf32>
    %35 = arith.addf %33, %34 : vector<2x32xf32>
    %c0_i32 = arith.constant 0 : i32
    %36 = vector.broadcast %c0_i32 : i32 to vector<2x1xi32>
    %37 = arith.cmpi eq, %6, %36 : vector<2x1xi32>
    %38 = vector.shape_cast %37 : vector<2x1xi1> to vector<2x1xi1>
    %39 = vector.broadcast %38 : vector<2x1xi1> to vector<2x32xi1>
    %40 = arith.select %39, %35, %7 : vector<2x32xi1>, vector<2x32xf32>
    %41 = vector.extract_strided_slice %2 {offsets = [2, 0], sizes = [2, 384], strides = [1, 1]} : vector<16x384xf32> to vector<2x384xf32>
    %cst_12 = arith.constant dense<0.000000e+00> : vector<2x384xf32>
    %42 = tpu.matmul %35, %3, %cst_12 {dimension_numbers = #tpu.dot_dimension_numbers<[1], [0], [0], [1], [0, 0, 1, 1], [], []>} : vector<2x32xf32>, vector<32x384xf32>, vector<2x384xf32> -> vector<2x384xf32>
    %43 = vector.extract_strided_slice %41 {offsets = [0, 0], sizes = [2, 32], strides = [1, 1]} : vector<2x384xf32> to vector<2x32xf32>
    %44 = vector.extract_strided_slice %42 {offsets = [0, 0], sizes = [2, 32], strides = [1, 1]} : vector<2x384xf32> to vector<2x32xf32>
    %45 = arith.addf %43, %44 : vector<2x32xf32>
    %46 = arith.negf %45 : vector<2x32xf32>
    %47 = math.exp %46 : vector<2x32xf32>
    %cst_13 = arith.constant 1.000000e+00 : f32
    %48 = vector.broadcast %cst_13 : f32 to vector<2x32xf32>
    %49 = arith.addf %48, %47 : vector<2x32xf32>
    %50 = arith.divf %48, %49 : vector<2x32xf32>
    %51 = vector.extract_strided_slice %41 {offsets = [0, 128], sizes = [2, 32], strides = [1, 1]} : vector<2x384xf32> to vector<2x32xf32>
    %52 = vector.extract_strided_slice %42 {offsets = [0, 128], sizes = [2, 32], strides = [1, 1]} : vector<2x384xf32> to vector<2x32xf32>
    %53 = arith.addf %51, %52 : vector<2x32xf32>
    %54 = arith.negf %53 : vector<2x32xf32>
    %55 = math.exp %54 : vector<2x32xf32>
    %cst_14 = arith.constant 1.000000e+00 : f32
    %56 = vector.broadcast %cst_14 : f32 to vector<2x32xf32>
    %57 = arith.addf %56, %55 : vector<2x32xf32>
    %58 = arith.divf %56, %57 : vector<2x32xf32>
    %59 = vector.extract_strided_slice %41 {offsets = [0, 256], sizes = [2, 32], strides = [1, 1]} : vector<2x384xf32> to vector<2x32xf32>
    %60 = vector.extract_strided_slice %42 {offsets = [0, 256], sizes = [2, 32], strides = [1, 1]} : vector<2x384xf32> to vector<2x32xf32>
    %61 = arith.mulf %50, %60 : vector<2x32xf32>
    %62 = arith.addf %59, %61 : vector<2x32xf32>
    %63 = math.tanh %62 : vector<2x32xf32>
    %cst_15 = arith.constant 1.000000e+00 : f32
    %64 = vector.broadcast %cst_15 : f32 to vector<2x32xf32>
    %65 = arith.subf %64, %58 : vector<2x32xf32>
    %66 = arith.mulf %65, %63 : vector<2x32xf32>
    %67 = arith.mulf %58, %35 : vector<2x32xf32>
    %68 = arith.addf %66, %67 : vector<2x32xf32>
    %c1_i32_16 = arith.constant 1 : i32
    %69 = vector.broadcast %c1_i32_16 : i32 to vector<2x1xi32>
    %70 = arith.cmpi eq, %6, %69 : vector<2x1xi32>
    %71 = vector.shape_cast %70 : vector<2x1xi1> to vector<2x1xi1>
    %72 = vector.broadcast %71 : vector<2x1xi1> to vector<2x32xi1>
    %73 = arith.select %72, %68, %40 : vector<2x32xi1>, vector<2x32xf32>
    %74 = vector.extract_strided_slice %2 {offsets = [4, 0], sizes = [2, 384], strides = [1, 1]} : vector<16x384xf32> to vector<2x384xf32>
    %cst_17 = arith.constant dense<0.000000e+00> : vector<2x384xf32>
    %75 = tpu.matmul %68, %3, %cst_17 {dimension_numbers = #tpu.dot_dimension_numbers<[1], [0], [0], [1], [0, 0, 1, 1], [], []>} : vector<2x32xf32>, vector<32x384xf32>, vector<2x384xf32> -> vector<2x384xf32>
    %76 = vector.extract_strided_slice %74 {offsets = [0, 0], sizes = [2, 32], strides = [1, 1]} : vector<2x384xf32> to vector<2x32xf32>
    %77 = vector.extract_strided_slice %75 {offsets = [0, 0], sizes = [2, 32], strides = [1, 1]} : vector<2x384xf32> to vector<2x32xf32>
    %78 = arith.addf %76, %77 : vector<2x32xf32>
    %79 = arith.negf %78 : vector<2x32xf32>
    %80 = math.exp %79 : vector<2x32xf32>
    %cst_18 = arith.constant 1.000000e+00 : f32
    %81 = vector.broadcast %cst_18 : f32 to vector<2x32xf32>
    %82 = arith.addf %81, %80 : vector<2x32xf32>
    %83 = arith.divf %81, %82 : vector<2x32xf32>
    %84 = vector.extract_strided_slice %74 {offsets = [0, 128], sizes = [2, 32], strides = [1, 1]} : vector<2x384xf32> to vector<2x32xf32>
    %85 = vector.extract_strided_slice %75 {offsets = [0, 128], sizes = [2, 32], strides = [1, 1]} : vector<2x384xf32> to vector<2x32xf32>
    %86 = arith.addf %84, %85 : vector<2x32xf32>
    %87 = arith.negf %86 : vector<2x32xf32>
    %88 = math.exp %87 : vector<2x32xf32>
    %cst_19 = arith.constant 1.000000e+00 : f32
    %89 = vector.broadcast %cst_19 : f32 to vector<2x32xf32>
    %90 = arith.addf %89, %88 : vector<2x32xf32>
    %91 = arith.divf %89, %90 : vector<2x32xf32>
    %92 = vector.extract_strided_slice %74 {offsets = [0, 256], sizes = [2, 32], strides = [1, 1]} : vector<2x384xf32> to vector<2x32xf32>
    %93 = vector.extract_strided_slice %75 {offsets = [0, 256], sizes = [2, 32], strides = [1, 1]} : vector<2x384xf32> to vector<2x32xf32>
    %94 = arith.mulf %83, %93 : vector<2x32xf32>
    %95 = arith.addf %92, %94 : vector<2x32xf32>
    %96 = math.tanh %95 : vector<2x32xf32>
    %cst_20 = arith.constant 1.000000e+00 : f32
    %97 = vector.broadcast %cst_20 : f32 to vector<2x32xf32>
    %98 = arith.subf %97, %91 : vector<2x32xf32>
    %99 = arith.mulf %98, %96 : vector<2x32xf32>
    %100 = arith.mulf %91, %68 : vector<2x32xf32>
    %101 = arith.addf %99, %100 : vector<2x32xf32>
    %c2_i32 = arith.constant 2 : i32
    %102 = vector.broadcast %c2_i32 : i32 to vector<2x1xi32>
    %103 = arith.cmpi eq, %6, %102 : vector<2x1xi32>
    %104 = vector.shape_cast %103 : vector<2x1xi1> to vector<2x1xi1>
    %105 = vector.broadcast %104 : vector<2x1xi1> to vector<2x32xi1>
    %106 = arith.select %105, %101, %73 : vector<2x32xi1>, vector<2x32xf32>
    %107 = vector.extract_strided_slice %2 {offsets = [6, 0], sizes = [2, 384], strides = [1, 1]} : vector<16x384xf32> to vector<2x384xf32>
    %cst_21 = arith.constant dense<0.000000e+00> : vector<2x384xf32>
    %108 = tpu.matmul %101, %3, %cst_21 {dimension_numbers = #tpu.dot_dimension_numbers<[1], [0], [0], [1], [0, 0, 1, 1], [], []>} : vector<2x32xf32>, vector<32x384xf32>, vector<2x384xf32> -> vector<2x384xf32>
    %109 = vector.extract_strided_slice %107 {offsets = [0, 0], sizes = [2, 32], strides = [1, 1]} : vector<2x384xf32> to vector<2x32xf32>
    %110 = vector.extract_strided_slice %108 {offsets = [0, 0], sizes = [2, 32], strides = [1, 1]} : vector<2x384xf32> to vector<2x32xf32>
    %111 = arith.addf %109, %110 : vector<2x32xf32>
    %112 = arith.negf %111 : vector<2x32xf32>
    %113 = math.exp %112 : vector<2x32xf32>
    %cst_22 = arith.constant 1.000000e+00 : f32
    %114 = vector.broadcast %cst_22 : f32 to vector<2x32xf32>
    %115 = arith.addf %114, %113 : vector<2x32xf32>
    %116 = arith.divf %114, %115 : vector<2x32xf32>
    %117 = vector.extract_strided_slice %107 {offsets = [0, 128], sizes = [2, 32], strides = [1, 1]} : vector<2x384xf32> to vector<2x32xf32>
    %118 = vector.extract_strided_slice %108 {offsets = [0, 128], sizes = [2, 32], strides = [1, 1]} : vector<2x384xf32> to vector<2x32xf32>
    %119 = arith.addf %117, %118 : vector<2x32xf32>
    %120 = arith.negf %119 : vector<2x32xf32>
    %121 = math.exp %120 : vector<2x32xf32>
    %cst_23 = arith.constant 1.000000e+00 : f32
    %122 = vector.broadcast %cst_23 : f32 to vector<2x32xf32>
    %123 = arith.addf %122, %121 : vector<2x32xf32>
    %124 = arith.divf %122, %123 : vector<2x32xf32>
    %125 = vector.extract_strided_slice %107 {offsets = [0, 256], sizes = [2, 32], strides = [1, 1]} : vector<2x384xf32> to vector<2x32xf32>
    %126 = vector.extract_strided_slice %108 {offsets = [0, 256], sizes = [2, 32], strides = [1, 1]} : vector<2x384xf32> to vector<2x32xf32>
    %127 = arith.mulf %116, %126 : vector<2x32xf32>
    %128 = arith.addf %125, %127 : vector<2x32xf32>
    %129 = math.tanh %128 : vector<2x32xf32>
    %cst_24 = arith.constant 1.000000e+00 : f32
    %130 = vector.broadcast %cst_24 : f32 to vector<2x32xf32>
    %131 = arith.subf %130, %124 : vector<2x32xf32>
    %132 = arith.mulf %131, %129 : vector<2x32xf32>
    %133 = arith.mulf %124, %101 : vector<2x32xf32>
    %134 = arith.addf %132, %133 : vector<2x32xf32>
    %c3_i32 = arith.constant 3 : i32
    %135 = vector.broadcast %c3_i32 : i32 to vector<2x1xi32>
    %136 = arith.cmpi eq, %6, %135 : vector<2x1xi32>
    %137 = vector.shape_cast %136 : vector<2x1xi1> to vector<2x1xi1>
    %138 = vector.broadcast %137 : vector<2x1xi1> to vector<2x32xi1>
    %139 = arith.select %138, %134, %106 : vector<2x32xi1>, vector<2x32xf32>
    %140 = vector.extract_strided_slice %2 {offsets = [8, 0], sizes = [2, 384], strides = [1, 1]} : vector<16x384xf32> to vector<2x384xf32>
    %cst_25 = arith.constant dense<0.000000e+00> : vector<2x384xf32>
    %141 = tpu.matmul %134, %3, %cst_25 {dimension_numbers = #tpu.dot_dimension_numbers<[1], [0], [0], [1], [0, 0, 1, 1], [], []>} : vector<2x32xf32>, vector<32x384xf32>, vector<2x384xf32> -> vector<2x384xf32>
    %142 = vector.extract_strided_slice %140 {offsets = [0, 0], sizes = [2, 32], strides = [1, 1]} : vector<2x384xf32> to vector<2x32xf32>
    %143 = vector.extract_strided_slice %141 {offsets = [0, 0], sizes = [2, 32], strides = [1, 1]} : vector<2x384xf32> to vector<2x32xf32>
    %144 = arith.addf %142, %143 : vector<2x32xf32>
    %145 = arith.negf %144 : vector<2x32xf32>
    %146 = math.exp %145 : vector<2x32xf32>
    %cst_26 = arith.constant 1.000000e+00 : f32
    %147 = vector.broadcast %cst_26 : f32 to vector<2x32xf32>
    %148 = arith.addf %147, %146 : vector<2x32xf32>
    %149 = arith.divf %147, %148 : vector<2x32xf32>
    %150 = vector.extract_strided_slice %140 {offsets = [0, 128], sizes = [2, 32], strides = [1, 1]} : vector<2x384xf32> to vector<2x32xf32>
    %151 = vector.extract_strided_slice %141 {offsets = [0, 128], sizes = [2, 32], strides = [1, 1]} : vector<2x384xf32> to vector<2x32xf32>
    %152 = arith.addf %150, %151 : vector<2x32xf32>
    %153 = arith.negf %152 : vector<2x32xf32>
    %154 = math.exp %153 : vector<2x32xf32>
    %cst_27 = arith.constant 1.000000e+00 : f32
    %155 = vector.broadcast %cst_27 : f32 to vector<2x32xf32>
    %156 = arith.addf %155, %154 : vector<2x32xf32>
    %157 = arith.divf %155, %156 : vector<2x32xf32>
    %158 = vector.extract_strided_slice %140 {offsets = [0, 256], sizes = [2, 32], strides = [1, 1]} : vector<2x384xf32> to vector<2x32xf32>
    %159 = vector.extract_strided_slice %141 {offsets = [0, 256], sizes = [2, 32], strides = [1, 1]} : vector<2x384xf32> to vector<2x32xf32>
    %160 = arith.mulf %149, %159 : vector<2x32xf32>
    %161 = arith.addf %158, %160 : vector<2x32xf32>
    %162 = math.tanh %161 : vector<2x32xf32>
    %cst_28 = arith.constant 1.000000e+00 : f32
    %163 = vector.broadcast %cst_28 : f32 to vector<2x32xf32>
    %164 = arith.subf %163, %157 : vector<2x32xf32>
    %165 = arith.mulf %164, %162 : vector<2x32xf32>
    %166 = arith.mulf %157, %134 : vector<2x32xf32>
    %167 = arith.addf %165, %166 : vector<2x32xf32>
    %c4_i32 = arith.constant 4 : i32
    %168 = vector.broadcast %c4_i32 : i32 to vector<2x1xi32>
    %169 = arith.cmpi eq, %6, %168 : vector<2x1xi32>
    %170 = vector.shape_cast %169 : vector<2x1xi1> to vector<2x1xi1>
    %171 = vector.broadcast %170 : vector<2x1xi1> to vector<2x32xi1>
    %172 = arith.select %171, %167, %139 : vector<2x32xi1>, vector<2x32xf32>
    %173 = vector.extract_strided_slice %2 {offsets = [10, 0], sizes = [2, 384], strides = [1, 1]} : vector<16x384xf32> to vector<2x384xf32>
    %cst_29 = arith.constant dense<0.000000e+00> : vector<2x384xf32>
    %174 = tpu.matmul %167, %3, %cst_29 {dimension_numbers = #tpu.dot_dimension_numbers<[1], [0], [0], [1], [0, 0, 1, 1], [], []>} : vector<2x32xf32>, vector<32x384xf32>, vector<2x384xf32> -> vector<2x384xf32>
    %175 = vector.extract_strided_slice %173 {offsets = [0, 0], sizes = [2, 32], strides = [1, 1]} : vector<2x384xf32> to vector<2x32xf32>
    %176 = vector.extract_strided_slice %174 {offsets = [0, 0], sizes = [2, 32], strides = [1, 1]} : vector<2x384xf32> to vector<2x32xf32>
    %177 = arith.addf %175, %176 : vector<2x32xf32>
    %178 = arith.negf %177 : vector<2x32xf32>
    %179 = math.exp %178 : vector<2x32xf32>
    %cst_30 = arith.constant 1.000000e+00 : f32
    %180 = vector.broadcast %cst_30 : f32 to vector<2x32xf32>
    %181 = arith.addf %180, %179 : vector<2x32xf32>
    %182 = arith.divf %180, %181 : vector<2x32xf32>
    %183 = vector.extract_strided_slice %173 {offsets = [0, 128], sizes = [2, 32], strides = [1, 1]} : vector<2x384xf32> to vector<2x32xf32>
    %184 = vector.extract_strided_slice %174 {offsets = [0, 128], sizes = [2, 32], strides = [1, 1]} : vector<2x384xf32> to vector<2x32xf32>
    %185 = arith.addf %183, %184 : vector<2x32xf32>
    %186 = arith.negf %185 : vector<2x32xf32>
    %187 = math.exp %186 : vector<2x32xf32>
    %cst_31 = arith.constant 1.000000e+00 : f32
    %188 = vector.broadcast %cst_31 : f32 to vector<2x32xf32>
    %189 = arith.addf %188, %187 : vector<2x32xf32>
    %190 = arith.divf %188, %189 : vector<2x32xf32>
    %191 = vector.extract_strided_slice %173 {offsets = [0, 256], sizes = [2, 32], strides = [1, 1]} : vector<2x384xf32> to vector<2x32xf32>
    %192 = vector.extract_strided_slice %174 {offsets = [0, 256], sizes = [2, 32], strides = [1, 1]} : vector<2x384xf32> to vector<2x32xf32>
    %193 = arith.mulf %182, %192 : vector<2x32xf32>
    %194 = arith.addf %191, %193 : vector<2x32xf32>
    %195 = math.tanh %194 : vector<2x32xf32>
    %cst_32 = arith.constant 1.000000e+00 : f32
    %196 = vector.broadcast %cst_32 : f32 to vector<2x32xf32>
    %197 = arith.subf %196, %190 : vector<2x32xf32>
    %198 = arith.mulf %197, %195 : vector<2x32xf32>
    %199 = arith.mulf %190, %167 : vector<2x32xf32>
    %200 = arith.addf %198, %199 : vector<2x32xf32>
    %c5_i32 = arith.constant 5 : i32
    %201 = vector.broadcast %c5_i32 : i32 to vector<2x1xi32>
    %202 = arith.cmpi eq, %6, %201 : vector<2x1xi32>
    %203 = vector.shape_cast %202 : vector<2x1xi1> to vector<2x1xi1>
    %204 = vector.broadcast %203 : vector<2x1xi1> to vector<2x32xi1>
    %205 = arith.select %204, %200, %172 : vector<2x32xi1>, vector<2x32xf32>
    %206 = vector.extract_strided_slice %2 {offsets = [12, 0], sizes = [2, 384], strides = [1, 1]} : vector<16x384xf32> to vector<2x384xf32>
    %cst_33 = arith.constant dense<0.000000e+00> : vector<2x384xf32>
    %207 = tpu.matmul %200, %3, %cst_33 {dimension_numbers = #tpu.dot_dimension_numbers<[1], [0], [0], [1], [0, 0, 1, 1], [], []>} : vector<2x32xf32>, vector<32x384xf32>, vector<2x384xf32> -> vector<2x384xf32>
    %208 = vector.extract_strided_slice %206 {offsets = [0, 0], sizes = [2, 32], strides = [1, 1]} : vector<2x384xf32> to vector<2x32xf32>
    %209 = vector.extract_strided_slice %207 {offsets = [0, 0], sizes = [2, 32], strides = [1, 1]} : vector<2x384xf32> to vector<2x32xf32>
    %210 = arith.addf %208, %209 : vector<2x32xf32>
    %211 = arith.negf %210 : vector<2x32xf32>
    %212 = math.exp %211 : vector<2x32xf32>
    %cst_34 = arith.constant 1.000000e+00 : f32
    %213 = vector.broadcast %cst_34 : f32 to vector<2x32xf32>
    %214 = arith.addf %213, %212 : vector<2x32xf32>
    %215 = arith.divf %213, %214 : vector<2x32xf32>
    %216 = vector.extract_strided_slice %206 {offsets = [0, 128], sizes = [2, 32], strides = [1, 1]} : vector<2x384xf32> to vector<2x32xf32>
    %217 = vector.extract_strided_slice %207 {offsets = [0, 128], sizes = [2, 32], strides = [1, 1]} : vector<2x384xf32> to vector<2x32xf32>
    %218 = arith.addf %216, %217 : vector<2x32xf32>
    %219 = arith.negf %218 : vector<2x32xf32>
    %220 = math.exp %219 : vector<2x32xf32>
    %cst_35 = arith.constant 1.000000e+00 : f32
    %221 = vector.broadcast %cst_35 : f32 to vector<2x32xf32>
    %222 = arith.addf %221, %220 : vector<2x32xf32>
    %223 = arith.divf %221, %222 : vector<2x32xf32>
    %224 = vector.extract_strided_slice %206 {offsets = [0, 256], sizes = [2, 32], strides = [1, 1]} : vector<2x384xf32> to vector<2x32xf32>
    %225 = vector.extract_strided_slice %207 {offsets = [0, 256], sizes = [2, 32], strides = [1, 1]} : vector<2x384xf32> to vector<2x32xf32>
    %226 = arith.mulf %215, %225 : vector<2x32xf32>
    %227 = arith.addf %224, %226 : vector<2x32xf32>
    %228 = math.tanh %227 : vector<2x32xf32>
    %cst_36 = arith.constant 1.000000e+00 : f32
    %229 = vector.broadcast %cst_36 : f32 to vector<2x32xf32>
    %230 = arith.subf %229, %223 : vector<2x32xf32>
    %231 = arith.mulf %230, %228 : vector<2x32xf32>
    %232 = arith.mulf %223, %200 : vector<2x32xf32>
    %233 = arith.addf %231, %232 : vector<2x32xf32>
    %c6_i32 = arith.constant 6 : i32
    %234 = vector.broadcast %c6_i32 : i32 to vector<2x1xi32>
    %235 = arith.cmpi eq, %6, %234 : vector<2x1xi32>
    %236 = vector.shape_cast %235 : vector<2x1xi1> to vector<2x1xi1>
    %237 = vector.broadcast %236 : vector<2x1xi1> to vector<2x32xi1>
    %238 = arith.select %237, %233, %205 : vector<2x32xi1>, vector<2x32xf32>
    %239 = vector.extract_strided_slice %2 {offsets = [14, 0], sizes = [2, 384], strides = [1, 1]} : vector<16x384xf32> to vector<2x384xf32>
    %cst_37 = arith.constant dense<0.000000e+00> : vector<2x384xf32>
    %240 = tpu.matmul %233, %3, %cst_37 {dimension_numbers = #tpu.dot_dimension_numbers<[1], [0], [0], [1], [0, 0, 1, 1], [], []>} : vector<2x32xf32>, vector<32x384xf32>, vector<2x384xf32> -> vector<2x384xf32>
    %241 = vector.extract_strided_slice %239 {offsets = [0, 0], sizes = [2, 32], strides = [1, 1]} : vector<2x384xf32> to vector<2x32xf32>
    %242 = vector.extract_strided_slice %240 {offsets = [0, 0], sizes = [2, 32], strides = [1, 1]} : vector<2x384xf32> to vector<2x32xf32>
    %243 = arith.addf %241, %242 : vector<2x32xf32>
    %244 = arith.negf %243 : vector<2x32xf32>
    %245 = math.exp %244 : vector<2x32xf32>
    %cst_38 = arith.constant 1.000000e+00 : f32
    %246 = vector.broadcast %cst_38 : f32 to vector<2x32xf32>
    %247 = arith.addf %246, %245 : vector<2x32xf32>
    %248 = arith.divf %246, %247 : vector<2x32xf32>
    %249 = vector.extract_strided_slice %239 {offsets = [0, 128], sizes = [2, 32], strides = [1, 1]} : vector<2x384xf32> to vector<2x32xf32>
    %250 = vector.extract_strided_slice %240 {offsets = [0, 128], sizes = [2, 32], strides = [1, 1]} : vector<2x384xf32> to vector<2x32xf32>
    %251 = arith.addf %249, %250 : vector<2x32xf32>
    %252 = arith.negf %251 : vector<2x32xf32>
    %253 = math.exp %252 : vector<2x32xf32>
    %cst_39 = arith.constant 1.000000e+00 : f32
    %254 = vector.broadcast %cst_39 : f32 to vector<2x32xf32>
    %255 = arith.addf %254, %253 : vector<2x32xf32>
    %256 = arith.divf %254, %255 : vector<2x32xf32>
    %257 = vector.extract_strided_slice %239 {offsets = [0, 256], sizes = [2, 32], strides = [1, 1]} : vector<2x384xf32> to vector<2x32xf32>
    %258 = vector.extract_strided_slice %240 {offsets = [0, 256], sizes = [2, 32], strides = [1, 1]} : vector<2x384xf32> to vector<2x32xf32>
    %259 = arith.mulf %248, %258 : vector<2x32xf32>
    %260 = arith.addf %257, %259 : vector<2x32xf32>
    %261 = math.tanh %260 : vector<2x32xf32>
    %cst_40 = arith.constant 1.000000e+00 : f32
    %262 = vector.broadcast %cst_40 : f32 to vector<2x32xf32>
    %263 = arith.subf %262, %256 : vector<2x32xf32>
    %264 = arith.mulf %263, %261 : vector<2x32xf32>
    %265 = arith.mulf %256, %233 : vector<2x32xf32>
    %266 = arith.addf %264, %265 : vector<2x32xf32>
    %c7_i32 = arith.constant 7 : i32
    %267 = vector.broadcast %c7_i32 : i32 to vector<2x1xi32>
    %268 = arith.cmpi eq, %6, %267 : vector<2x1xi32>
    %269 = vector.shape_cast %268 : vector<2x1xi1> to vector<2x1xi1>
    %270 = vector.broadcast %269 : vector<2x1xi1> to vector<2x32xi1>
    %271 = arith.select %270, %266, %238 : vector<2x32xi1>, vector<2x32xf32>
    %c0_41 = arith.constant 0 : index
    %c0_42 = arith.constant 0 : index
    %272 = vector.load %arg8[%c0_41, %c0_42] : memref<32x32xf32, #tpu.memory_space<vmem>>, vector<32x32xf32>
    %cst_43 = arith.constant dense<0.000000e+00> : vector<2x32xf32>
    %273 = tpu.matmul %271, %272, %cst_43 {dimension_numbers = #tpu.dot_dimension_numbers<[1], [0], [0], [1], [0, 0, 1, 1], [], []>} : vector<2x32xf32>, vector<32x32xf32>, vector<2x32xf32> -> vector<2x32xf32>
    %c0_44 = arith.constant 0 : index
    %c0_45 = arith.constant 0 : index
    %274 = vector.load %arg9[%c0_44, %c0_45] : memref<1x32xf32, #tpu.memory_space<vmem>>, vector<1x32xf32>
    %275 = vector.broadcast %274 : vector<1x32xf32> to vector<2x32xf32>
    %276 = arith.addf %273, %275 : vector<2x32xf32>
    %cst_46 = arith.constant 0.000000e+00 : f32
    %277 = vector.broadcast %cst_46 : f32 to vector<2x32xf32>
    %278 = arith.maximumf %276, %277 : vector<2x32xf32>
    %279 = arith.mulf %278, %278 : vector<2x32xf32>
    %cst_47 = arith.constant dense<0.000000e+00> : vector<2xf32>
    %280 = vector.multi_reduction <add>, %279, %cst_47 [1] : vector<2x32xf32> to vector<2xf32>
    %281 = vector.shape_cast %280 : vector<2xf32> to vector<2x1xf32>
    %cst_48 = arith.constant 1.000000e-24 : f32
    %282 = vector.broadcast %cst_48 : f32 to vector<2x1xf32>
    %283 = arith.maximumf %281, %282 : vector<2x1xf32>
    %284 = math.rsqrt %283 : vector<2x1xf32>
    %285 = vector.broadcast %284 : vector<2x1xf32> to vector<2x32xf32>
    %286 = arith.mulf %278, %285 : vector<2x32xf32>
    %c0_49 = arith.constant 0 : index
    %c0_50 = arith.constant 0 : index
    %287 = vector.load %arg1[%c0_49, %c0_50] : memref<16x32xf32, #tpu.memory_space<vmem>>, vector<16x32xf32>
    %c0_51 = arith.constant 0 : index
    %c0_52 = arith.constant 0 : index
    %288 = vector.load %arg4[%c0_51, %c0_52] : memref<32x4xf32, #tpu.memory_space<vmem>>, vector<32x4xf32>
    %cst_53 = arith.constant dense<0.000000e+00> : vector<16x4xf32>
    %289 = tpu.matmul %287, %288, %cst_53 {dimension_numbers = #tpu.dot_dimension_numbers<[1], [0], [0], [1], [0, 0, 1, 1], [], []>} : vector<16x32xf32>, vector<32x4xf32>, vector<16x4xf32> -> vector<16x4xf32>
    %cst_54 = arith.constant 1.000000e+01 : f32
    %290 = vector.broadcast %cst_54 : f32 to vector<16x4xf32>
    %291 = arith.mulf %289, %290 : vector<16x4xf32>
    %cst_55 = arith.constant dense<0xFF800000> : vector<16xf32>
    %292 = vector.multi_reduction <maximumf>, %291, %cst_55 [1] : vector<16x4xf32> to vector<16xf32>
    %293 = vector.shape_cast %292 : vector<16xf32> to vector<16x1xf32>
    %294 = vector.broadcast %293 : vector<16x1xf32> to vector<16x4xf32>
    %295 = arith.subf %291, %294 : vector<16x4xf32>
    %296 = math.exp %295 : vector<16x4xf32>
    %cst_56 = arith.constant dense<0.000000e+00> : vector<16xf32>
    %297 = vector.multi_reduction <add>, %296, %cst_56 [1] : vector<16x4xf32> to vector<16xf32>
    %298 = vector.shape_cast %297 : vector<16xf32> to vector<16x1xf32>
    %299 = vector.broadcast %298 : vector<16x1xf32> to vector<16x4xf32>
    %300 = arith.divf %296, %299 : vector<16x4xf32>
    %301 = tpu.iota {dimensions = array<i32: 0>} : vector<16x1xi32>
    %c8_i32 = arith.constant 8 : i32
    %c0_i32_57 = arith.constant 0 : i32
    %302 = arith.cmpi eq, %c8_i32, %c0_i32_57 : i32
    %c1_i32_58 = arith.constant 1 : i32
    %303 = arith.select %302, %c1_i32_58, %c8_i32 : i32
    %304 = vector.broadcast %303 : i32 to vector<16x1xi32>
    %305 = arith.remsi %301, %304 : vector<16x1xi32>
    %c0_i32_59 = arith.constant 0 : i32
    %306 = vector.broadcast %c0_i32_59 : i32 to vector<16x1xi32>
    %307 = arith.cmpi ne, %305, %306 : vector<16x1xi32>
    %c0_i32_60 = arith.constant 0 : i32
    %308 = vector.broadcast %c0_i32_60 : i32 to vector<16x1xi32>
    %309 = arith.cmpi slt, %305, %308 : vector<16x1xi32>
    %c0_i32_61 = arith.constant 0 : i32
    %310 = arith.cmpi slt, %303, %c0_i32_61 : i32
    %311 = vector.broadcast %310 : i1 to vector<16x1xi1>
    %312 = vector.broadcast %311 : vector<16x1xi1> to vector<16x1xi1>
    %313 = arith.xori %309, %312 : vector<16x1xi1>
    %314 = arith.andi %313, %307 : vector<16x1xi1>
    %315 = vector.broadcast %303 : i32 to vector<16x1xi32>
    %316 = arith.addi %305, %315 : vector<16x1xi32>
    %317 = arith.select %314, %316, %305 : vector<16x1xi1>, vector<16x1xi32>
    %c0_62 = arith.constant 0 : index
    %c0_63 = arith.constant 0 : index
    %318 = vector.load %arg3[%c0_62, %c0_63] : memref<16x1xi32, #tpu.memory_space<vmem>>, vector<16x1xi32>
    %319 = arith.cmpi slt, %317, %318 : vector<16x1xi32>
    %320 = arith.extui %319 : vector<16x1xi1> to vector<16x1xi32>
    %321 = arith.sitofp %320 : vector<16x1xi32> to vector<16x1xf32>
    %322 = vector.broadcast %321 : vector<16x1xf32> to vector<16x4xf32>
    %323 = arith.mulf %300, %322 : vector<16x4xf32>
    %c0_64 = arith.constant 0 : index
    %c0_65 = arith.constant 0 : index
    %324 = vector.load %arg5[%c0_64, %c0_65] : memref<4x32xf32, #tpu.memory_space<vmem>>, vector<4x32xf32>
    %325 = vector.extract_strided_slice %323 {offsets = [0, 0], sizes = [8, 4], strides = [1, 1]} : vector<16x4xf32> to vector<8x4xf32>
    %326 = vector.extract_strided_slice %287 {offsets = [0, 0], sizes = [8, 32], strides = [1, 1]} : vector<16x32xf32> to vector<8x32xf32>
    "tpu.trace_start"() <{level = 10 : i32, message = "sk,sd->kd"}> : () -> ()
    %cst_66 = arith.constant dense<0.000000e+00> : vector<4x32xf32>
    %327 = tpu.matmul %325, %326, %cst_66 {dimension_numbers = #tpu.dot_dimension_numbers<[0], [0], [1], [1], [0, 1, 1, 1], [], []>} : vector<8x4xf32>, vector<8x32xf32>, vector<4x32xf32> -> vector<4x32xf32>
    "tpu.trace_stop"() : () -> ()
    %328 = arith.mulf %327, %327 : vector<4x32xf32>
    %cst_67 = arith.constant dense<0.000000e+00> : vector<4xf32>
    %329 = vector.multi_reduction <add>, %328, %cst_67 [1] : vector<4x32xf32> to vector<4xf32>
    %330 = vector.shape_cast %329 : vector<4xf32> to vector<4x1xf32>
    %cst_68 = arith.constant 1.000000e-24 : f32
    %331 = vector.broadcast %cst_68 : f32 to vector<4x1xf32>
    %332 = arith.maximumf %330, %331 : vector<4x1xf32>
    %333 = math.rsqrt %332 : vector<4x1xf32>
    %334 = vector.broadcast %333 : vector<4x1xf32> to vector<4x32xf32>
    %335 = arith.mulf %327, %334 : vector<4x32xf32>
    %cst_69 = arith.constant dense<0.000000e+00> : vector<4xf32>
    %336 = vector.multi_reduction <add>, %325, %cst_69 [0] : vector<8x4xf32> to vector<4xf32>
    %337 = vector.shape_cast %336 : vector<4xf32> to vector<4x1xf32>
    %cst_70 = arith.constant 0.000000e+00 : f32
    %338 = vector.broadcast %cst_70 : f32 to vector<4x1xf32>
    %339 = arith.cmpf ogt, %337, %338 : vector<4x1xf32>
    %340 = vector.shape_cast %339 : vector<4x1xi1> to vector<4x1xi1>
    %341 = vector.broadcast %340 : vector<4x1xi1> to vector<4x32xi1>
    %342 = arith.select %341, %335, %324 : vector<4x32xi1>, vector<4x32xf32>
    %343 = vector.extract_strided_slice %342 {offsets = [0, 0], sizes = [1, 32], strides = [1, 1]} : vector<4x32xf32> to vector<1x32xf32>
    %344 = vector.extract_strided_slice %342 {offsets = [1, 0], sizes = [1, 32], strides = [1, 1]} : vector<4x32xf32> to vector<1x32xf32>
    %345 = vector.extract_strided_slice %342 {offsets = [2, 0], sizes = [1, 32], strides = [1, 1]} : vector<4x32xf32> to vector<1x32xf32>
    %346 = vector.extract_strided_slice %342 {offsets = [3, 0], sizes = [1, 32], strides = [1, 1]} : vector<4x32xf32> to vector<1x32xf32>
    %347 = tpu.concatenate %343, %344, %345, %346 in 1 : vector<1x32xf32>, vector<1x32xf32>, vector<1x32xf32>, vector<1x32xf32> -> vector<1x128xf32>
    %348 = vector.extract_strided_slice %323 {offsets = [8, 0], sizes = [8, 4], strides = [1, 1]} : vector<16x4xf32> to vector<8x4xf32>
    %349 = vector.extract_strided_slice %287 {offsets = [8, 0], sizes = [8, 32], strides = [1, 1]} : vector<16x32xf32> to vector<8x32xf32>
    "tpu.trace_start"() <{level = 10 : i32, message = "sk,sd->kd"}> : () -> ()
    %cst_71 = arith.constant dense<0.000000e+00> : vector<4x32xf32>
    %350 = tpu.matmul %348, %349, %cst_71 {dimension_numbers = #tpu.dot_dimension_numbers<[0], [0], [1], [1], [0, 1, 1, 1], [], []>} : vector<8x4xf32>, vector<8x32xf32>, vector<4x32xf32> -> vector<4x32xf32>
    "tpu.trace_stop"() : () -> ()
    %351 = arith.mulf %350, %350 : vector<4x32xf32>
    %cst_72 = arith.constant dense<0.000000e+00> : vector<4xf32>
    %352 = vector.multi_reduction <add>, %351, %cst_72 [1] : vector<4x32xf32> to vector<4xf32>
    %353 = vector.shape_cast %352 : vector<4xf32> to vector<4x1xf32>
    %cst_73 = arith.constant 1.000000e-24 : f32
    %354 = vector.broadcast %cst_73 : f32 to vector<4x1xf32>
    %355 = arith.maximumf %353, %354 : vector<4x1xf32>
    %356 = math.rsqrt %355 : vector<4x1xf32>
    %357 = vector.broadcast %356 : vector<4x1xf32> to vector<4x32xf32>
    %358 = arith.mulf %350, %357 : vector<4x32xf32>
    %cst_74 = arith.constant dense<0.000000e+00> : vector<4xf32>
    %359 = vector.multi_reduction <add>, %348, %cst_74 [0] : vector<8x4xf32> to vector<4xf32>
    %360 = vector.shape_cast %359 : vector<4xf32> to vector<4x1xf32>
    %cst_75 = arith.constant 0.000000e+00 : f32
    %361 = vector.broadcast %cst_75 : f32 to vector<4x1xf32>
    %362 = arith.cmpf ogt, %360, %361 : vector<4x1xf32>
    %363 = vector.shape_cast %362 : vector<4x1xi1> to vector<4x1xi1>
    %364 = vector.broadcast %363 : vector<4x1xi1> to vector<4x32xi1>
    %365 = arith.select %364, %358, %324 : vector<4x32xi1>, vector<4x32xf32>
    %366 = vector.extract_strided_slice %365 {offsets = [0, 0], sizes = [1, 32], strides = [1, 1]} : vector<4x32xf32> to vector<1x32xf32>
    %367 = vector.extract_strided_slice %365 {offsets = [1, 0], sizes = [1, 32], strides = [1, 1]} : vector<4x32xf32> to vector<1x32xf32>
    %368 = vector.extract_strided_slice %365 {offsets = [2, 0], sizes = [1, 32], strides = [1, 1]} : vector<4x32xf32> to vector<1x32xf32>
    %369 = vector.extract_strided_slice %365 {offsets = [3, 0], sizes = [1, 32], strides = [1, 1]} : vector<4x32xf32> to vector<1x32xf32>
    %370 = tpu.concatenate %366, %367, %368, %369 in 1 : vector<1x32xf32>, vector<1x32xf32>, vector<1x32xf32>, vector<1x32xf32> -> vector<1x128xf32>
    %371 = tpu.concatenate %347, %370 in 0 : vector<1x128xf32>, vector<1x128xf32> -> vector<2x128xf32>
    %c0_76 = arith.constant 0 : index
    %c0_77 = arith.constant 0 : index
    %372 = vector.load %arg10[%c0_76, %c0_77] : memref<2x128xf32, #tpu.memory_space<vmem>>, vector<2x128xf32>
    tpu.vector_store %arg10[%c0_76, %c0_77], %371 {strides = array<i32>} : memref<2x128xf32, #tpu.memory_space<vmem>>, vector<2x128xf32>,
    %373 = tpu.concatenate %286, %286, %286, %286 in 1 : vector<2x32xf32>, vector<2x32xf32>, vector<2x32xf32>, vector<2x32xf32> -> vector<2x128xf32>
    %374 = arith.mulf %371, %373 : vector<2x128xf32>
    %375 = vector.extract_strided_slice %374 {offsets = [0, 0], sizes = [2, 32], strides = [1, 1]} : vector<2x128xf32> to vector<2x32xf32>
    %cst_78 = arith.constant dense<0.000000e+00> : vector<2xf32>
    %376 = vector.multi_reduction <add>, %375, %cst_78 [1] : vector<2x32xf32> to vector<2xf32>
    %377 = vector.shape_cast %376 : vector<2xf32> to vector<2x1xf32>
    %378 = vector.extract_strided_slice %374 {offsets = [0, 32], sizes = [2, 32], strides = [1, 1]} : vector<2x128xf32> to vector<2x32xf32>
    %cst_79 = arith.constant dense<0.000000e+00> : vector<2xf32>
    %379 = vector.multi_reduction <add>, %378, %cst_79 [1] : vector<2x32xf32> to vector<2xf32>
    %380 = vector.shape_cast %379 : vector<2xf32> to vector<2x1xf32>
    %381 = vector.extract_strided_slice %374 {offsets = [0, 64], sizes = [2, 32], strides = [1, 1]} : vector<2x128xf32> to vector<2x32xf32>
    %cst_80 = arith.constant dense<0.000000e+00> : vector<2xf32>
    %382 = vector.multi_reduction <add>, %381, %cst_80 [1] : vector<2x32xf32> to vector<2xf32>
    %383 = vector.shape_cast %382 : vector<2xf32> to vector<2x1xf32>
    %384 = vector.extract_strided_slice %374 {offsets = [0, 96], sizes = [2, 32], strides = [1, 1]} : vector<2x128xf32> to vector<2x32xf32>
    %cst_81 = arith.constant dense<0.000000e+00> : vector<2xf32>
    %385 = vector.multi_reduction <add>, %384, %cst_81 [1] : vector<2x32xf32> to vector<2xf32>
    %386 = vector.shape_cast %385 : vector<2xf32> to vector<2x1xf32>
    %387 = tpu.concatenate %377, %380, %383, %386 in 1 : vector<2x1xf32>, vector<2x1xf32>, vector<2x1xf32>, vector<2x1xf32> -> vector<2x4xf32>
    %cst_82 = arith.constant 1.000000e+01 : f32
    %388 = vector.broadcast %cst_82 : f32 to vector<2x4xf32>
    %389 = arith.mulf %387, %388 : vector<2x4xf32>
    %cst_83 = arith.constant dense<0xFF800000> : vector<2xf32>
    %390 = vector.multi_reduction <maximumf>, %389, %cst_83 [1] : vector<2x4xf32> to vector<2xf32>
    %391 = vector.shape_cast %390 : vector<2xf32> to vector<2x1xf32>
    %392 = vector.broadcast %391 : vector<2x1xf32> to vector<2x4xf32>
    %393 = arith.subf %389, %392 : vector<2x4xf32>
    %394 = math.exp %393 : vector<2x4xf32>
    %cst_84 = arith.constant dense<0.000000e+00> : vector<2xf32>
    %395 = vector.multi_reduction <add>, %394, %cst_84 [1] : vector<2x4xf32> to vector<2xf32>
    %396 = vector.shape_cast %395 : vector<2xf32> to vector<2x1xf32>
    %397 = vector.broadcast %396 : vector<2x1xf32> to vector<2x4xf32>
    %398 = arith.divf %394, %397 : vector<2x4xf32>
    %c0_85 = arith.constant 0 : index
    %c0_86 = arith.constant 0 : index
    %399 = vector.load %arg11[%c0_85, %c0_86] : memref<2x4xf32, #tpu.memory_space<vmem>>, vector<2x4xf32>
    tpu.vector_store %arg11[%c0_85, %c0_86], %398 {strides = array<i32>} : memref<2x4xf32, #tpu.memory_space<vmem>>, vector<2x4xf32>,
    return
  }
}

</mosaic_0001>

<llo_original>
// kernel: devcl_forward.1
$region0: #{devcl_forward.1}
  #allocation0 [shape = 'u32[]', space=smem, size = 0x4, offset = 0x4, fixed_abs, tag = 'smem constant byte address 0x4 - core index']
  #allocation1 [shape = 'u32[72,128]{1,0:T(1,128)}', space=vmem, size = 0x9000, scoped, tag = 'internal scratch']
  %s0 = inlined_call_operand.vmem [shape: f32[16,32], index: 0, kind: input, shape index: {}]
  %s1 = inlined_call_operand.vmem [shape: f32[16,32], index: 1, kind: input, shape index: {}]
  %s2 = inlined_call_operand.vmem [shape: s32[2,1], index: 2, kind: input, shape index: {}]
  %s3 = inlined_call_operand.vmem [shape: s32[16,1], index: 3, kind: input, shape index: {}]
  %s4 = inlined_call_operand.vmem [shape: f32[32,4], index: 4, kind: input, shape index: {}]
  %s5 = inlined_call_operand.vmem [shape: f32[4,32], index: 5, kind: input, shape index: {}]
  %s6 = inlined_call_operand.vmem [shape: f32[32,384], index: 6, kind: input, shape index: {}]
  %s7 = inlined_call_operand.vmem [shape: f32[32,384], index: 7, kind: input, shape index: {}]
  %s8 = inlined_call_operand.vmem [shape: f32[32,32], index: 8, kind: input, shape index: {}]
  %s9 = inlined_call_operand.vmem [shape: f32[1,32], index: 9, kind: input, shape index: {}]
  %s10 = inlined_call_operand.vmem [shape: f32[2,128], index: 10, kind: output, shape index: {0}]
  %s11 = inlined_call_operand.hbm [shape: f32[2,4], index: 11, kind: output, shape index: {1}]
  %12 = xla_tuple %s10, %s11
  %s13 = sld [smem:[#allocation0]]
  $region58: #{devcl_forward.1} parent=0
    _
  %s15 = ssub.s32 1, %s13
  %s16 = scalar_select 0, %s15, %s13
  $region1: #{devcl_forward.1} parent=0
    #allocation2 [shape = 'u8[1024]{0}', space=vmem, size = 0x400, scoped, tag = 'output window, operand 1, single buffered']
    #allocation3 [shape = 's32[1]{0}', space=sflag, size = 0x4, scoped, tag = 'scoped memory for devcl_forward.1']
    %17 = vsyncpa [#allocation3], 0
    // Predicated region
    $region2: #{devcl_forward.1} parent=1 // pred_check
      _
    $region3: #{devcl_forward.1} parent=1 // pred_check_branch
      %19 = sbr.rel (0) target = $region5
    $region4: #{devcl_forward.1} parent=1 // pred_region
      _
    $region5: #{devcl_forward.1} parent=1 // pred_fallthru
      _
    // Predicated region
    $region6: #{devcl_forward.1} parent=1 // pred_check
      _
    $region7: #{devcl_forward.1} parent=1 // pred_check_branch
      %21 = sbr.rel (0) target = $region9
    $region8: #{devcl_forward.1} parent=1 // pred_region
      _
    $region9: #{devcl_forward.1} parent=1 // pred_fallthru
      _
    // Predicated region
    $region10: #{devcl_forward.1} parent=1 // pred_check
      _
    $region11: #{devcl_forward.1} parent=1 // pred_check_branch
      %23 = sbr.rel (0) target = $region13
    $region12: #{devcl_forward.1} parent=1 // pred_region
      _
    $region13: #{devcl_forward.1} parent=1 // pred_fallthru
      _
    // Predicated region
    $region14: #{devcl_forward.1} parent=1 // pred_check
      _
    $region15: #{devcl_forward.1} parent=1 // pred_check_branch
      %25 = sbr.rel (0) target = $region17
    $region16: #{devcl_forward.1} parent=1 // pred_region
      _
    $region17: #{devcl_forward.1} parent=1 // pred_fallthru
      _
    // Predicated region
    $region18: #{devcl_forward.1} parent=1 // pred_check
      _
    $region19: #{devcl_forward.1} parent=1 // pred_check_branch
      %27 = sbr.rel (0) target = $region21
    $region20: #{devcl_forward.1} parent=1 // pred_region
      _
    $region21: #{devcl_forward.1} parent=1 // pred_fallthru
      _
    // Predicated region
    $region22: #{devcl_forward.1} parent=1 // pred_check
      _
    $region23: #{devcl_forward.1} parent=1 // pred_check_branch
      %29 = sbr.rel (0) target = $region25
    $region24: #{devcl_forward.1} parent=1 // pred_region
      _
    $region25: #{devcl_forward.1} parent=1 // pred_fallthru
      _
    // Predicated region
    $region26: #{devcl_forward.1} parent=1 // pred_check
      _
    $region27: #{devcl_forward.1} parent=1 // pred_check_branch
      %31 = sbr.rel (0) target = $region29
    $region28: #{devcl_forward.1} parent=1 // pred_region
      _
    $region29: #{devcl_forward.1} parent=1 // pred_fallthru
      _
    // Predicated region
    $region30: #{devcl_forward.1} parent=1 // pred_check
      _
    $region31: #{devcl_forward.1} parent=1 // pred_check_branch
      %33 = sbr.rel (0) target = $region33
    $region32: #{devcl_forward.1} parent=1 // pred_region
      _
    $region33: #{devcl_forward.1} parent=1 // pred_fallthru
      _
    // Predicated region
    $region34: #{devcl_forward.1} parent=1 // pred_check
      _
    $region35: #{devcl_forward.1} parent=1 // pred_check_branch
      %35 = sbr.rel (0) target = $region37
    $region36: #{devcl_forward.1} parent=1 // pred_region
      _
    $region37: #{devcl_forward.1} parent=1 // pred_fallthru
      _
    // Predicated region
    $region38: #{devcl_forward.1} parent=1 // pred_check
      _
    $region39: #{devcl_forward.1} parent=1 // pred_check_branch
      %37 = sbr.rel (0) target = $region41
    $region40: #{devcl_forward.1} parent=1 // pred_region
      _
    $region41: #{devcl_forward.1} parent=1 // pred_fallthru
      _
    %v38 = vld [vmem:[%s0] sm:$0xff]
    %v39 = vld [vmem:[%s0 + $0x8] sm:$0xff]
    %v40 = vld [vmem:[%s6] sm:$0xff]
    %v41 = vld [vmem:[%s6 + $0x8] sm:$0xff]
    %v42 = vld [vmem:[%s6 + $0x10] sm:$0xff]
    %v43 = vld [vmem:[%s6 + $0x18] sm:$0xff]
    %v44 = vld [vmem:[%s6 + $0x20] sm:$0xff]
    %v45 = vld [vmem:[%s6 + $0x28] sm:$0xff]
    %v46 = vld [vmem:[%s6 + $0x30] sm:$0xff]
    %v47 = vld [vmem:[%s6 + $0x38] sm:$0xff]
    %v48 = vld [vmem:[%s6 + $0x40] sm:$0xff]
    %v49 = vld [vmem:[%s6 + $0x48] sm:$0xff]
    %v50 = vld [vmem:[%s6 + $0x50] sm:$0xff]
    %v51 = vld [vmem:[%s6 + $0x58] sm:$0xff]
    %vm52 = vcmask 261120
    %v54 = vsel %vm52, %v38, 0
    %v57 = vsel %vm52, %v39, 0
    %59 = vmatpush.msra.mxu0 0.0
    %60 = vmatpush.msra.mxu0 0.0
    %61 = vmatpush.msra.mxu0 0.0
    %62 = vmatpush.msra.mxu0 0.0
    %63 = vmatpush.msra.mxu0 0.0
    %64 = vmatpush.msra.mxu0 0.0
    %65 = vmatpush.msra.mxu0 0.0
    %66 = vmatpush.msra.mxu0 0.0
    %67 = vmatpush.msra.mxu0 0.0
    %68 = vmatpush.msra.mxu0 0.0
    %69 = vmatpush.msra.mxu0 0.0
    %70 = vmatpush.msra.mxu0 0.0
    %71 = vmatpush.msra.mxu0 %v49
    %72 = vmatpush.msra.mxu0 %v46
    %73 = vmatpush.msra.mxu0 %v43
    %74 = vmatpush.msra.mxu0 %v40
    %75 = vmatmul.f32.gmra.mxu0 %v54
    %v76 = vpop.f32.mrf.mxu0
    %v77 = vadd.f32 0.0, %v76
    %78 = vmatmul.f32.gmra.mxu0 %v57
    %v79 = vpop.f32.mrf.mxu0
    %v80 = vadd.f32 0.0, %v79
    %81 = vdwg.mxu0
    %82 = vmatpush.msra.mxu0 0.0
    %83 = vmatpush.msra.mxu0 0.0
    %84 = vmatpush.msra.mxu0 0.0
    %85 = vmatpush.msra.mxu0 0.0
    %86 = vmatpush.msra.mxu0 0.0
    %87 = vmatpush.msra.mxu0 0.0
    %88 = vmatpush.msra.mxu0 0.0
    %89 = vmatpush.msra.mxu0 0.0
    %90 = vmatpush.msra.mxu0 0.0
    %91 = vmatpush.msra.mxu0 0.0
    %92 = vmatpush.msra.mxu0 0.0
    %93 = vmatpush.msra.mxu0 0.0
    %94 = vmatpush.msra.mxu0 %v50
    %95 = vmatpush.msra.mxu0 %v47
    %96 = vmatpush.msra.mxu0 %v44
    %97 = vmatpush.msra.mxu0 %v41
    %98 = vmatmul.f32.gmra.mxu0 %v54
    %v99 = vpop.f32.mrf.mxu0
    %v100 = vadd.f32 0.0, %v99
    %101 = vmatmul.f32.gmra.mxu0 %v57
    %v102 = vpop.f32.mrf.mxu0
    %v103 = vadd.f32 0.0, %v102
    %104 = vdwg.mxu0
    %105 = vmatpush.msra.mxu0 0.0
    %106 = vmatpush.msra.mxu0 0.0
    %107 = vmatpush.msra.mxu0 0.0
    %108 = vmatpush.msra.mxu0 0.0
    %109 = vmatpush.msra.mxu0 0.0
    %110 = vmatpush.msra.mxu0 0.0
    %111 = vmatpush.msra.mxu0 0.0
    %112 = vmatpush.msra.mxu0 0.0
    %113 = vmatpush.msra.mxu0 0.0
    %114 = vmatpush.msra.mxu0 0.0
    %115 = vmatpush.msra.mxu0 0.0
    %116 = vmatpush.msra.mxu0 0.0
    %117 = vmatpush.msra.mxu0 %v51
    %118 = vmatpush.msra.mxu0 %v48
    %119 = vmatpush.msra.mxu0 %v45
    %120 = vmatpush.msra.mxu0 %v42
    %121 = vmatmul.f32.gmra.mxu0 %v54
    %v122 = vpop.f32.mrf.mxu0
    %v123 = vadd.f32 0.0, %v122
    %124 = vmatmul.f32.gmra.mxu0 %v57
    %v125 = vpop.f32.mrf.mxu0
    %v126 = vadd.f32 0.0, %v125
    %127 = vdwg.mxu0
    %v128 = vld [vmem:[%s7] sm:$0xff]
    %v129 = vld [vmem:[%s7 + $0x8] sm:$0xff]
    %v130 = vld [vmem:[%s7 + $0x10] sm:$0xff]
    %v131 = vld [vmem:[%s7 + $0x18] sm:$0xff]
    %v132 = vld [vmem:[%s7 + $0x20] sm:$0xff]
    %v133 = vld [vmem:[%s7 + $0x28] sm:$0xff]
    %v134 = vld [vmem:[%s7 + $0x30] sm:$0xff]
    %v135 = vld [vmem:[%s7 + $0x38] sm:$0xff]
    %v136 = vld [vmem:[%s7 + $0x40] sm:$0xff]
    %v137 = vld [vmem:[%s7 + $0x48] sm:$0xff]
    %v138 = vld [vmem:[%s7 + $0x50] sm:$0xff]
    %v139 = vld [vmem:[%s7 + $0x58] sm:$0xff]
    %v140 = vld [vmem:[%s2] sm:$0x3]
    %v141 = vsub.s32 %v140, 1
    %v143 = vsel %vm52, 0.0, 0
    %145 = vmatpush.msra.mxu0 0.0
    %146 = vmatpush.msra.mxu0 0.0
    %147 = vmatpush.msra.mxu0 0.0
    %148 = vmatpush.msra.mxu0 0.0
    %149 = vmatpush.msra.mxu0 0.0
    %150 = vmatpush.msra.mxu0 0.0
    %151 = vmatpush.msra.mxu0 0.0
    %152 = vmatpush.msra.mxu0 0.0
    %153 = vmatpush.msra.mxu0 0.0
    %154 = vmatpush.msra.mxu0 0.0
    %155 = vmatpush.msra.mxu0 0.0
    %156 = vmatpush.msra.mxu0 0.0
    %157 = vmatpush.msra.mxu0 %v137
    %158 = vmatpush.msra.mxu0 %v134
    %159 = vmatpush.msra.mxu0 %v131
    %160 = vmatpush.msra.mxu0 %v128
    %161 = vmatmul.f32.gmra.mxu0 %v143
    %v162 = vpop.f32.mrf.mxu0
    %v163 = vadd.f32 0.0, %v162
    %164 = vdwg.mxu0
    %165 = vmatpush.msra.mxu0 0.0
    %166 = vmatpush.msra.mxu0 0.0
    %167 = vmatpush.msra.mxu0 0.0
    %168 = vmatpush.msra.mxu0 0.0
    %169 = vmatpush.msra.mxu0 0.0
    %170 = vmatpush.msra.mxu0 0.0
    %171 = vmatpush.msra.mxu0 0.0
    %172 = vmatpush.msra.mxu0 0.0
    %173 = vmatpush.msra.mxu0 0.0
    %174 = vmatpush.msra.mxu0 0.0
    %175 = vmatpush.msra.mxu0 0.0
    %176 = vmatpush.msra.mxu0 0.0
    %177 = vmatpush.msra.mxu0 %v138
    %178 = vmatpush.msra.mxu0 %v135
    %179 = vmatpush.msra.mxu0 %v132
    %180 = vmatpush.msra.mxu0 %v129
    %181 = vmatmul.f32.gmra.mxu0 %v143
    %v182 = vpop.f32.mrf.mxu0
    %v183 = vadd.f32 0.0, %v182
    %184 = vdwg.mxu0
    %185 = vmatpush.msra.mxu0 0.0
    %186 = vmatpush.msra.mxu0 0.0
    %187 = vmatpush.msra.mxu0 0.0
    %188 = vmatpush.msra.mxu0 0.0
    %189 = vmatpush.msra.mxu0 0.0
    %190 = vmatpush.msra.mxu0 0.0
    %191 = vmatpush.msra.mxu0 0.0
    %192 = vmatpush.msra.mxu0 0.0
    %193 = vmatpush.msra.mxu0 0.0
    %194 = vmatpush.msra.mxu0 0.0
    %195 = vmatpush.msra.mxu0 0.0
    %196 = vmatpush.msra.mxu0 0.0
    %197 = vmatpush.msra.mxu0 %v139
    %198 = vmatpush.msra.mxu0 %v136
    %199 = vmatpush.msra.mxu0 %v133
    %200 = vmatpush.msra.mxu0 %v130
    %201 = vmatmul.f32.gmra.mxu0 %v143
    %v202 = vpop.f32.mrf.mxu0
    %v203 = vadd.f32 0.0, %v202
    %204 = vdwg.mxu0
    %v205 = vadd.f32 %v77, %v163
    %v206 = vxor.u32 %v205, 2147483648
    %v207 = vmul.f32 %v206, 1.442695
    %v208 = vpow.pop %v207
    %v209 = vadd.f32 %v208, 1.0
    %v210 = vrcp.pop %v209
    %v211 = vmul.f32 %v209, %v210
    %v212 = vsub.f32 1.0, %v211
    %v213 = vmul.f32 %v210, %v212
    %v214 = vadd.f32 %v210, %v213
    %vm215 = vweird.f32 %v209
    %vm216 = vweird.f32 %v210
    %vm217 = vmor %vm215, %vm216
    %v218 = vsel %vm217, %v210, %v214
    %v219 = vand.u32 2147483647, %v209
    %vm220 = vcmp.eq.f32.partialorder %v219, 8.507059e+37
    %v221 = vand.u32 %v209, 2147483648
    %v222 = vor.u32 1.1754944e-38, %v221
    %v223 = vsel %vm220, %v222, %v218
    %v224 = vmul.f32 1.0, %v223
    %v225 = vadd.f32 %v100, %v183
    %v226 = vxor.u32 %v225, 2147483648
    %v227 = vmul.f32 %v226, 1.442695
    %v228 = vpow.pop %v227
    %v229 = vadd.f32 %v228, 1.0
    %v230 = vrcp.pop %v229
    %v231 = vmul.f32 %v229, %v230
    %v232 = vsub.f32 1.0, %v231
    %v233 = vmul.f32 %v230, %v232
    %v234 = vadd.f32 %v230, %v233
    %vm235 = vweird.f32 %v229
    %vm236 = vweird.f32 %v230
    %vm237 = vmor %vm235, %vm236
    %v238 = vsel %vm237, %v230, %v234
    %v239 = vand.u32 2147483647, %v229
    %vm240 = vcmp.eq.f32.partialorder %v239, 8.507059e+37
    %v241 = vand.u32 %v229, 2147483648
    %v242 = vor.u32 1.1754944e-38, %v241
    %v243 = vsel %vm240, %v242, %v238
    %v244 = vmul.f32 1.0, %v243
    %v245 = vmul.f32 %v224, %v203
    %v246 = vadd.f32 %v123, %v245
    %v247 = vtanh.pop %v246
    %v248 = vsub.f32 1.0, %v244
    %v249 = vmul.f32 %v248, %v247
    %v250 = vmul.f32 %v244, 0.0
    %v251 = vadd.f32 %v249, %v250
    %vm252 = vcmp.eq.s32.totalorder %v141, 0
    %v253 = vsel %vm252, 1, 0
    %254 = vset.pattern.permute.xlu0 0
    %255 = vperm.xlu0 %254, %v253
    %v256 = vpop.permute.xlu0 %255
    %vm257 = vcmp.eq.s32.totalorder %v256, 1
    %v258 = vsel %vm257, %v251, 0.0
    %v260 = vsel %vm52, %v251, 0
    %262 = vmatpush.msra.mxu0 0.0
    %263 = vmatpush.msra.mxu0 0.0
    %264 = vmatpush.msra.mxu0 0.0
    %265 = vmatpush.msra.mxu0 0.0
    %266 = vmatpush.msra.mxu0 0.0
    %267 = vmatpush.msra.mxu0 0.0
    %268 = vmatpush.msra.mxu0 0.0
    %269 = vmatpush.msra.mxu0 0.0
    %270 = vmatpush.msra.mxu0 0.0
    %271 = vmatpush.msra.mxu0 0.0
    %272 = vmatpush.msra.mxu0 0.0
    %273 = vmatpush.msra.mxu0 0.0
    %274 = vmatpush.msra.mxu0 %v137
    %275 = vmatpush.msra.mxu0 %v134
    %276 = vmatpush.msra.mxu0 %v131
    %277 = vmatpush.msra.mxu0 %v128
    %278 = vmatmul.f32.gmra.mxu0 %v260
    %v279 = vpop.f32.mrf.mxu0
    %v280 = vadd.f32 0.0, %v279
    %281 = vdwg.mxu0
    %282 = vmatpush.msra.mxu0 0.0
    %283 = vmatpush.msra.mxu0 0.0
    %284 = vmatpush.msra.mxu0 0.0
    %285 = vmatpush.msra.mxu0 0.0
    %286 = vmatpush.msra.mxu0 0.0
    %287 = vmatpush.msra.mxu0 0.0
    %288 = vmatpush.msra.mxu0 0.0
    %289 = vmatpush.msra.mxu0 0.0
    %290 = vmatpush.msra.mxu0 0.0
    %291 = vmatpush.msra.mxu0 0.0
    %292 = vmatpush.msra.mxu0 0.0
    %293 = vmatpush.msra.mxu0 0.0
    %294 = vmatpush.msra.mxu0 %v138
    %295 = vmatpush.msra.mxu0 %v135
    %296 = vmatpush.msra.mxu0 %v132
    %297 = vmatpush.msra.mxu0 %v129
    %298 = vmatmul.f32.gmra.mxu0 %v260
    %v299 = vpop.f32.mrf.mxu0
    %v300 = vadd.f32 0.0, %v299
    %301 = vdwg.mxu0
    %302 = vmatpush.msra.mxu0 0.0
    %303 = vmatpush.msra.mxu0 0.0
    %304 = vmatpush.msra.mxu0 0.0
    %305 = vmatpush.msra.mxu0 0.0
    %306 = vmatpush.msra.mxu0 0.0
    %307 = vmatpush.msra.mxu0 0.0
    %308 = vmatpush.msra.mxu0 0.0
    %309 = vmatpush.msra.mxu0 0.0
    %310 = vmatpush.msra.mxu0 0.0
    %311 = vmatpush.msra.mxu0 0.0
    %312 = vmatpush.msra.mxu0 0.0
    %313 = vmatpush.msra.mxu0 0.0
    %314 = vmatpush.msra.mxu0 %v139
    %315 = vmatpush.msra.mxu0 %v136
    %316 = vmatpush.msra.mxu0 %v133
    %317 = vmatpush.msra.mxu0 %v130
    %318 = vmatmul.f32.gmra.mxu0 %v260
    %v319 = vpop.f32.mrf.mxu0
    %v320 = vadd.f32 0.0, %v319
    %321 = vdwg.mxu0
    %v323 = vrot.slane %v280, 6
    %v325 = vadd.f32 %v77, %v323
    %v326 = vxor.u32 %v325, 2147483648
    %v327 = vmul.f32 %v326, 1.442695
    %v328 = vpow.pop %v327
    %v329 = vadd.f32 %v328, 1.0
    %v330 = vrcp.pop %v329
    %v331 = vmul.f32 %v329, %v330
    %v332 = vsub.f32 1.0, %v331
    %v333 = vmul.f32 %v330, %v332
    %v334 = vadd.f32 %v330, %v333
    %vm335 = vweird.f32 %v329
    %vm336 = vweird.f32 %v330
    %vm337 = vmor %vm335, %vm336
    %v338 = vsel %vm337, %v330, %v334
    %v339 = vand.u32 2147483647, %v329
    %vm340 = vcmp.eq.f32.partialorder %v339, 8.507059e+37
    %v341 = vand.u32 %v329, 2147483648
    %v342 = vor.u32 1.1754944e-38, %v341
    %v343 = vsel %vm340, %v342, %v338
    %v344 = vmul.f32 1.0, %v343
    %v346 = vrot.slane %v300, 6
    %v348 = vadd.f32 %v100, %v346
    %v349 = vxor.u32 %v348, 2147483648
    %v350 = vmul.f32 %v349, 1.442695
    %v351 = vpow.pop %v350
    %v352 = vadd.f32 %v351, 1.0
    %v353 = vrcp.pop %v352
    %v354 = vmul.f32 %v352, %v353
    %v355 = vsub.f32 1.0, %v354
    %v356 = vmul.f32 %v353, %v355
    %v357 = vadd.f32 %v353, %v356
    %vm358 = vweird.f32 %v352
    %vm359 = vweird.f32 %v353
    %vm360 = vmor %vm358, %vm359
    %v361 = vsel %vm360, %v353, %v357
    %v362 = vand.u32 2147483647, %v352
    %vm363 = vcmp.eq.f32.partialorder %v362, 8.507059e+37
    %v364 = vand.u32 %v352, 2147483648
    %v365 = vor.u32 1.1754944e-38, %v364
    %v366 = vsel %vm363, %v365, %v361
    %v367 = vmul.f32 1.0, %v366
    %v369 = vrot.slane %v320, 6
    %v371 = vmul.f32 %v344, %v369
    %v372 = vadd.f32 %v123, %v371
    %v373 = vtanh.pop %v372
    %v374 = vsub.f32 1.0, %v367
    %v375 = vmul.f32 %v374, %v373
    %v376 = vrot.slane %v251, 6
    %v378 = vmul.f32 %v367, %v376
    %v379 = vadd.f32 %v375, %v378
    %vm380 = vcmp.eq.s32.totalorder %v141, 1
    %v381 = vsel %vm380, 1, 0
    %382 = vset.pattern.permute.xlu0 0
    %383 = vperm.xlu0 %382, %v381
    %v384 = vpop.permute.xlu0 %383
    %vm385 = vcmp.eq.s32.totalorder %v384, 1
    %v387 = vrot.slane %v379, 2
    %v389 = vsel %vm385, %v387, %v258
    %v390 = vsel %vm52, %v387, 0
    %392 = vmatpush.msra.mxu0 0.0
    %393 = vmatpush.msra.mxu0 0.0
    %394 = vmatpush.msra.mxu0 0.0
    %395 = vmatpush.msra.mxu0 0.0
    %396 = vmatpush.msra.mxu0 0.0
    %397 = vmatpush.msra.mxu0 0.0
    %398 = vmatpush.msra.mxu0 0.0
    %399 = vmatpush.msra.mxu0 0.0
    %400 = vmatpush.msra.mxu0 0.0
    %401 = vmatpush.msra.mxu0 0.0
    %402 = vmatpush.msra.mxu0 0.0
    %403 = vmatpush.msra.mxu0 0.0
    %404 = vmatpush.msra.mxu0 %v137
    %405 = vmatpush.msra.mxu0 %v134
    %406 = vmatpush.msra.mxu0 %v131
    %407 = vmatpush.msra.mxu0 %v128
    %408 = vmatmul.f32.gmra.mxu0 %v390
    %v409 = vpop.f32.mrf.mxu0
    %v410 = vadd.f32 0.0, %v409
    %411 = vdwg.mxu0
    %412 = vmatpush.msra.mxu0 0.0
    %413 = vmatpush.msra.mxu0 0.0
    %414 = vmatpush.msra.mxu0 0.0
    %415 = vmatpush.msra.mxu0 0.0
    %416 = vmatpush.msra.mxu0 0.0
    %417 = vmatpush.msra.mxu0 0.0
    %418 = vmatpush.msra.mxu0 0.0
    %419 = vmatpush.msra.mxu0 0.0
    %420 = vmatpush.msra.mxu0 0.0
    %421 = vmatpush.msra.mxu0 0.0
    %422 = vmatpush.msra.mxu0 0.0
    %423 = vmatpush.msra.mxu0 0.0
    %424 = vmatpush.msra.mxu0 %v138
    %425 = vmatpush.msra.mxu0 %v135
    %426 = vmatpush.msra.mxu0 %v132
    %427 = vmatpush.msra.mxu0 %v129
    %428 = vmatmul.f32.gmra.mxu0 %v390
    %v429 = vpop.f32.mrf.mxu0
    %v430 = vadd.f32 0.0, %v429
    %431 = vdwg.mxu0
    %432 = vmatpush.msra.mxu0 0.0
    %433 = vmatpush.msra.mxu0 0.0
    %434 = vmatpush.msra.mxu0 0.0
    %435 = vmatpush.msra.mxu0 0.0
    %436 = vmatpush.msra.mxu0 0.0
    %437 = vmatpush.msra.mxu0 0.0
    %438 = vmatpush.msra.mxu0 0.0
    %439 = vmatpush.msra.mxu0 0.0
    %440 = vmatpush.msra.mxu0 0.0
    %441 = vmatpush.msra.mxu0 0.0
    %442 = vmatpush.msra.mxu0 0.0
    %443 = vmatpush.msra.mxu0 0.0
    %444 = vmatpush.msra.mxu0 %v139
    %445 = vmatpush.msra.mxu0 %v136
    %446 = vmatpush.msra.mxu0 %v133
    %447 = vmatpush.msra.mxu0 %v130
    %448 = vmatmul.f32.gmra.mxu0 %v390
    %v449 = vpop.f32.mrf.mxu0
    %v450 = vadd.f32 0.0, %v449
    %451 = vdwg.mxu0
    %v453 = vrot.slane %v410, 4
    %v455 = vadd.f32 %v77, %v453
    %v456 = vxor.u32 %v455, 2147483648
    %v457 = vmul.f32 %v456, 1.442695
    %v458 = vpow.pop %v457
    %v459 = vadd.f32 %v458, 1.0
    %v460 = vrcp.pop %v459
    %v461 = vmul.f32 %v459, %v460
    %v462 = vsub.f32 1.0, %v461
    %v463 = vmul.f32 %v460, %v462
    %v464 = vadd.f32 %v460, %v463
    %vm465 = vweird.f32 %v459
    %vm466 = vweird.f32 %v460
    %vm467 = vmor %vm465, %vm466
    %v468 = vsel %vm467, %v460, %v464
    %v469 = vand.u32 2147483647, %v459
    %vm470 = vcmp.eq.f32.partialorder %v469, 8.507059e+37
    %v471 = vand.u32 %v459, 2147483648
    %v472 = vor.u32 1.1754944e-38, %v471
    %v473 = vsel %vm470, %v472, %v468
    %v474 = vmul.f32 1.0, %v473
    %v476 = vrot.slane %v430, 4
    %v478 = vadd.f32 %v100, %v476
    %v479 = vxor.u32 %v478, 2147483648
    %v480 = vmul.f32 %v479, 1.442695
    %v481 = vpow.pop %v480
    %v482 = vadd.f32 %v481, 1.0
    %v483 = vrcp.pop %v482
    %v484 = vmul.f32 %v482, %v483
    %v485 = vsub.f32 1.0, %v484
    %v486 = vmul.f32 %v483, %v485
    %v487 = vadd.f32 %v483, %v486
    %vm488 = vweird.f32 %v482
    %vm489 = vweird.f32 %v483
    %vm490 = vmor %vm488, %vm489
    %v491 = vsel %vm490, %v483, %v487
    %v492 = vand.u32 2147483647, %v482
    %vm493 = vcmp.eq.f32.partialorder %v492, 8.507059e+37
    %v494 = vand.u32 %v482, 2147483648
    %v495 = vor.u32 1.1754944e-38, %v494
    %v496 = vsel %vm493, %v495, %v491
    %v497 = vmul.f32 1.0, %v496
    %v499 = vrot.slane %v450, 4
    %v501 = vmul.f32 %v474, %v499
    %v502 = vadd.f32 %v123, %v501
    %v503 = vtanh.pop %v502
    %v504 = vsub.f32 1.0, %v497
    %v505 = vmul.f32 %v504, %v503
    %v506 = vrot.slane %v379, 6
    %v508 = vmul.f32 %v497, %v506
    %v509 = vadd.f32 %v505, %v508
    %vm510 = vcmp.eq.s32.totalorder %v141, 2
    %v511 = vsel %vm510, 1, 0
    %512 = vset.pattern.permute.xlu0 0
    %513 = vperm.xlu0 %512, %v511
    %v514 = vpop.permute.xlu0 %513
    %vm515 = vcmp.eq.s32.totalorder %v514, 1
    %v517 = vrot.slane %v509, 4
    %v519 = vsel %vm515, %v517, %v389
    %v520 = vsel %vm52, %v517, 0
    %522 = vmatpush.msra.mxu0 0.0
    %523 = vmatpush.msra.mxu0 0.0
    %524 = vmatpush.msra.mxu0 0.0
    %525 = vmatpush.msra.mxu0 0.0
    %526 = vmatpush.msra.mxu0 0.0
    %527 = vmatpush.msra.mxu0 0.0
    %528 = vmatpush.msra.mxu0 0.0
    %529 = vmatpush.msra.mxu0 0.0
    %530 = vmatpush.msra.mxu0 0.0
    %531 = vmatpush.msra.mxu0 0.0
    %532 = vmatpush.msra.mxu0 0.0
    %533 = vmatpush.msra.mxu0 0.0
    %534 = vmatpush.msra.mxu0 %v137
    %535 = vmatpush.msra.mxu0 %v134
    %536 = vmatpush.msra.mxu0 %v131
    %537 = vmatpush.msra.mxu0 %v128
    %538 = vmatmul.f32.gmra.mxu0 %v520
    %v539 = vpop.f32.mrf.mxu0
    %v540 = vadd.f32 0.0, %v539
    %541 = vdwg.mxu0
    %542 = vmatpush.msra.mxu0 0.0
    %543 = vmatpush.msra.mxu0 0.0
    %544 = vmatpush.msra.mxu0 0.0
    %545 = vmatpush.msra.mxu0 0.0
    %546 = vmatpush.msra.mxu0 0.0
    %547 = vmatpush.msra.mxu0 0.0
    %548 = vmatpush.msra.mxu0 0.0
    %549 = vmatpush.msra.mxu0 0.0
    %550 = vmatpush.msra.mxu0 0.0
    %551 = vmatpush.msra.mxu0 0.0
    %552 = vmatpush.msra.mxu0 0.0
    %553 = vmatpush.msra.mxu0 0.0
    %554 = vmatpush.msra.mxu0 %v138
    %555 = vmatpush.msra.mxu0 %v135
    %556 = vmatpush.msra.mxu0 %v132
    %557 = vmatpush.msra.mxu0 %v129
    %558 = vmatmul.f32.gmra.mxu0 %v520
    %v559 = vpop.f32.mrf.mxu0
    %v560 = vadd.f32 0.0, %v559
    %561 = vdwg.mxu0
    %562 = vmatpush.msra.mxu0 0.0
    %563 = vmatpush.msra.mxu0 0.0
    %564 = vmatpush.msra.mxu0 0.0
    %565 = vmatpush.msra.mxu0 0.0
    %566 = vmatpush.msra.mxu0 0.0
    %567 = vmatpush.msra.mxu0 0.0
    %568 = vmatpush.msra.mxu0 0.0
    %569 = vmatpush.msra.mxu0 0.0
    %570 = vmatpush.msra.mxu0 0.0
    %571 = vmatpush.msra.mxu0 0.0
    %572 = vmatpush.msra.mxu0 0.0
    %573 = vmatpush.msra.mxu0 0.0
    %574 = vmatpush.msra.mxu0 %v139
    %575 = vmatpush.msra.mxu0 %v136
    %576 = vmatpush.msra.mxu0 %v133
    %577 = vmatpush.msra.mxu0 %v130
    %578 = vmatmul.f32.gmra.mxu0 %v520
    %v579 = vpop.f32.mrf.mxu0
    %v580 = vadd.f32 0.0, %v579
    %581 = vdwg.mxu0
    %v583 = vrot.slane %v540, 2
    %v585 = vadd.f32 %v77, %v583
    %v586 = vxor.u32 %v585, 2147483648
    %v587 = vmul.f32 %v586, 1.442695
    %v588 = vpow.pop %v587
    %v589 = vadd.f32 %v588, 1.0
    %v590 = vrcp.pop %v589
    %v591 = vmul.f32 %v589, %v590
    %v592 = vsub.f32 1.0, %v591
    %v593 = vmul.f32 %v590, %v592
    %v594 = vadd.f32 %v590, %v593
    %vm595 = vweird.f32 %v589
    %vm596 = vweird.f32 %v590
    %vm597 = vmor %vm595, %vm596
    %v598 = vsel %vm597, %v590, %v594
    %v599 = vand.u32 2147483647, %v589
    %vm600 = vcmp.eq.f32.partialorder %v599, 8.507059e+37
    %v601 = vand.u32 %v589, 2147483648
    %v602 = vor.u32 1.1754944e-38, %v601
    %v603 = vsel %vm600, %v602, %v598
    %v604 = vmul.f32 1.0, %v603
    %v606 = vrot.slane %v560, 2
    %v608 = vadd.f32 %v100, %v606
    %v609 = vxor.u32 %v608, 2147483648
    %v610 = vmul.f32 %v609, 1.442695
    %v611 = vpow.pop %v610
    %v612 = vadd.f32 %v611, 1.0
    %v613 = vrcp.pop %v612
    %v614 = vmul.f32 %v612, %v613
    %v615 = vsub.f32 1.0, %v614
    %v616 = vmul.f32 %v613, %v615
    %v617 = vadd.f32 %v613, %v616
    %vm618 = vweird.f32 %v612
    %vm619 = vweird.f32 %v613
    %vm620 = vmor %vm618, %vm619
    %v621 = vsel %vm620, %v613, %v617
    %v622 = vand.u32 2147483647, %v612
    %vm623 = vcmp.eq.f32.partialorder %v622, 8.507059e+37
    %v624 = vand.u32 %v612, 2147483648
    %v625 = vor.u32 1.1754944e-38, %v624
    %v626 = vsel %vm623, %v625, %v621
    %v627 = vmul.f32 1.0, %v626
    %v629 = vrot.slane %v580, 2
    %v631 = vmul.f32 %v604, %v629
    %v632 = vadd.f32 %v123, %v631
    %v633 = vtanh.pop %v632
    %v634 = vsub.f32 1.0, %v627
    %v635 = vmul.f32 %v634, %v633
    %v636 = vrot.slane %v509, 6
    %v638 = vmul.f32 %v627, %v636
    %v639 = vadd.f32 %v635, %v638
    %vm640 = vcmp.eq.s32.totalorder %v141, 3
    %v641 = vsel %vm640, 1, 0
    %642 = vset.pattern.permute.xlu0 0
    %643 = vperm.xlu0 %642, %v641
    %v644 = vpop.permute.xlu0 %643
    %vm645 = vcmp.eq.s32.totalorder %v644, 1
    %v647 = vrot.slane %v639, 6
    %v649 = vsel %vm645, %v647, %v519
    %v650 = vsel %vm52, %v647, 0
    %652 = vmatpush.msra.mxu0 0.0
    %653 = vmatpush.msra.mxu0 0.0
    %654 = vmatpush.msra.mxu0 0.0
    %655 = vmatpush.msra.mxu0 0.0
    %656 = vmatpush.msra.mxu0 0.0
    %657 = vmatpush.msra.mxu0 0.0
    %658 = vmatpush.msra.mxu0 0.0
    %659 = vmatpush.msra.mxu0 0.0
    %660 = vmatpush.msra.mxu0 0.0
    %661 = vmatpush.msra.mxu0 0.0
    %662 = vmatpush.msra.mxu0 0.0
    %663 = vmatpush.msra.mxu0 0.0
    %664 = vmatpush.msra.mxu0 %v137
    %665 = vmatpush.msra.mxu0 %v134
    %666 = vmatpush.msra.mxu0 %v131
    %667 = vmatpush.msra.mxu0 %v128
    %668 = vmatmul.f32.gmra.mxu0 %v650
    %v669 = vpop.f32.mrf.mxu0
    %v670 = vadd.f32 0.0, %v669
    %671 = vdwg.mxu0
    %672 = vmatpush.msra.mxu0 0.0
    %673 = vmatpush.msra.mxu0 0.0
    %674 = vmatpush.msra.mxu0 0.0
    %675 = vmatpush.msra.mxu0 0.0
    %676 = vmatpush.msra.mxu0 0.0
    %677 = vmatpush.msra.mxu0 0.0
    %678 = vmatpush.msra.mxu0 0.0
    %679 = vmatpush.msra.mxu0 0.0
    %680 = vmatpush.msra.mxu0 0.0
    %681 = vmatpush.msra.mxu0 0.0
    %682 = vmatpush.msra.mxu0 0.0
    %683 = vmatpush.msra.mxu0 0.0
    %684 = vmatpush.msra.mxu0 %v138
    %685 = vmatpush.msra.mxu0 %v135
    %686 = vmatpush.msra.mxu0 %v132
    %687 = vmatpush.msra.mxu0 %v129
    %688 = vmatmul.f32.gmra.mxu0 %v650
    %v689 = vpop.f32.mrf.mxu0
    %v690 = vadd.f32 0.0, %v689
    %691 = vdwg.mxu0
    %692 = vmatpush.msra.mxu0 0.0
    %693 = vmatpush.msra.mxu0 0.0
    %694 = vmatpush.msra.mxu0 0.0
    %695 = vmatpush.msra.mxu0 0.0
    %696 = vmatpush.msra.mxu0 0.0
    %697 = vmatpush.msra.mxu0 0.0
    %698 = vmatpush.msra.mxu0 0.0
    %699 = vmatpush.msra.mxu0 0.0
    %700 = vmatpush.msra.mxu0 0.0
    %701 = vmatpush.msra.mxu0 0.0
    %702 = vmatpush.msra.mxu0 0.0
    %703 = vmatpush.msra.mxu0 0.0
    %704 = vmatpush.msra.mxu0 %v139
    %705 = vmatpush.msra.mxu0 %v136
    %706 = vmatpush.msra.mxu0 %v133
    %707 = vmatpush.msra.mxu0 %v130
    %708 = vmatmul.f32.gmra.mxu0 %v650
    %v709 = vpop.f32.mrf.mxu0
    %v710 = vadd.f32 0.0, %v709
    %711 = vdwg.mxu0
    %v712 = vadd.f32 %v80, %v670
    %v713 = vxor.u32 %v712, 2147483648
    %v714 = vmul.f32 %v713, 1.442695
    %v715 = vpow.pop %v714
    %v716 = vadd.f32 %v715, 1.0
    %v717 = vrcp.pop %v716
    %v718 = vmul.f32 %v716, %v717
    %v719 = vsub.f32 1.0, %v718
    %v720 = vmul.f32 %v717, %v719
    %v721 = vadd.f32 %v717, %v720
    %vm722 = vweird.f32 %v716
    %vm723 = vweird.f32 %v717
    %vm724 = vmor %vm722, %vm723
    %v725 = vsel %vm724, %v717, %v721
    %v726 = vand.u32 2147483647, %v716
    %vm727 = vcmp.eq.f32.partialorder %v726, 8.507059e+37
    %v728 = vand.u32 %v716, 2147483648
    %v729 = vor.u32 1.1754944e-38, %v728
    %v730 = vsel %vm727, %v729, %v725
    %v731 = vmul.f32 1.0, %v730
    %v732 = vadd.f32 %v103, %v690
    %v733 = vxor.u32 %v732, 2147483648
    %v734 = vmul.f32 %v733, 1.442695
    %v735 = vpow.pop %v734
    %v736 = vadd.f32 %v735, 1.0
    %v737 = vrcp.pop %v736
    %v738 = vmul.f32 %v736, %v737
    %v739 = vsub.f32 1.0, %v738
    %v740 = vmul.f32 %v737, %v739
    %v741 = vadd.f32 %v737, %v740
    %vm742 = vweird.f32 %v736
    %vm743 = vweird.f32 %v737
    %vm744 = vmor %vm742, %vm743
    %v745 = vsel %vm744, %v737, %v741
    %v746 = vand.u32 2147483647, %v736
    %vm747 = vcmp.eq.f32.partialorder %v746, 8.507059e+37
    %v748 = vand.u32 %v736, 2147483648
    %v749 = vor.u32 1.1754944e-38, %v748
    %v750 = vsel %vm747, %v749, %v745
    %v751 = vmul.f32 1.0, %v750
    %v752 = vmul.f32 %v731, %v710
    %v753 = vadd.f32 %v126, %v752
    %v754 = vtanh.pop %v753
    %v755 = vsub.f32 1.0, %v751
    %v756 = vmul.f32 %v755, %v754
    %v757 = vmul.f32 %v751, %v647
    %v758 = vadd.f32 %v756, %v757
    %vm759 = vcmp.eq.s32.totalorder %v141, 4
    %v760 = vsel %vm759, 1, 0
    %761 = vset.pattern.permute.xlu0 0
    %762 = vperm.xlu0 %761, %v760
    %v763 = vpop.permute.xlu0 %762
    %vm764 = vcmp.eq.s32.totalorder %v763, 1
    %v765 = vsel %vm764, %v758, %v649
    %v767 = vsel %vm52, %v758, 0
    %769 = vmatpush.msra.mxu0 0.0
    %770 = vmatpush.msra.mxu0 0.0
    %771 = vmatpush.msra.mxu0 0.0
    %772 = vmatpush.msra.mxu0 0.0
    %773 = vmatpush.msra.mxu0 0.0
    %774 = vmatpush.msra.mxu0 0.0
    %775 = vmatpush.msra.mxu0 0.0
    %776 = vmatpush.msra.mxu0 0.0
    %777 = vmatpush.msra.mxu0 0.0
    %778 = vmatpush.msra.mxu0 0.0
    %779 = vmatpush.msra.mxu0 0.0
    %780 = vmatpush.msra.mxu0 0.0
    %781 = vmatpush.msra.mxu0 %v137
    %782 = vmatpush.msra.mxu0 %v134
    %783 = vmatpush.msra.mxu0 %v131
    %784 = vmatpush.msra.mxu0 %v128
    %785 = vmatmul.f32.gmra.mxu0 %v767
    %v786 = vpop.f32.mrf.mxu0
    %v787 = vadd.f32 0.0, %v786
    %788 = vdwg.mxu0
    %789 = vmatpush.msra.mxu0 0.0
    %790 = vmatpush.msra.mxu0 0.0
    %791 = vmatpush.msra.mxu0 0.0
    %792 = vmatpush.msra.mxu0 0.0
    %793 = vmatpush.msra.mxu0 0.0
    %794 = vmatpush.msra.mxu0 0.0
    %795 = vmatpush.msra.mxu0 0.0
    %796 = vmatpush.msra.mxu0 0.0
    %797 = vmatpush.msra.mxu0 0.0
    %798 = vmatpush.msra.mxu0 0.0
    %799 = vmatpush.msra.mxu0 0.0
    %800 = vmatpush.msra.mxu0 0.0
    %801 = vmatpush.msra.mxu0 %v138
    %802 = vmatpush.msra.mxu0 %v135
    %803 = vmatpush.msra.mxu0 %v132
    %804 = vmatpush.msra.mxu0 %v129
    %805 = vmatmul.f32.gmra.mxu0 %v767
    %v806 = vpop.f32.mrf.mxu0
    %v807 = vadd.f32 0.0, %v806
    %808 = vdwg.mxu0
    %809 = vmatpush.msra.mxu0 0.0
    %810 = vmatpush.msra.mxu0 0.0
    %811 = vmatpush.msra.mxu0 0.0
    %812 = vmatpush.msra.mxu0 0.0
    %813 = vmatpush.msra.mxu0 0.0
    %814 = vmatpush.msra.mxu0 0.0
    %815 = vmatpush.msra.mxu0 0.0
    %816 = vmatpush.msra.mxu0 0.0
    %817 = vmatpush.msra.mxu0 0.0
    %818 = vmatpush.msra.mxu0 0.0
    %819 = vmatpush.msra.mxu0 0.0
    %820 = vmatpush.msra.mxu0 0.0
    %821 = vmatpush.msra.mxu0 %v139
    %822 = vmatpush.msra.mxu0 %v136
    %823 = vmatpush.msra.mxu0 %v133
    %824 = vmatpush.msra.mxu0 %v130
    %825 = vmatmul.f32.gmra.mxu0 %v767
    %v826 = vpop.f32.mrf.mxu0
    %v827 = vadd.f32 0.0, %v826
    %828 = vdwg.mxu0
    %v830 = vrot.slane %v787, 6
    %v832 = vadd.f32 %v80, %v830
    %v833 = vxor.u32 %v832, 2147483648
    %v834 = vmul.f32 %v833, 1.442695
    %v835 = vpow.pop %v834
    %v836 = vadd.f32 %v835, 1.0
    %v837 = vrcp.pop %v836
    %v838 = vmul.f32 %v836, %v837
    %v839 = vsub.f32 1.0, %v838
    %v840 = vmul.f32 %v837, %v839
    %v841 = vadd.f32 %v837, %v840
    %vm842 = vweird.f32 %v836
    %vm843 = vweird.f32 %v837
    %vm844 = vmor %vm842, %vm843
    %v845 = vsel %vm844, %v837, %v841
    %v846 = vand.u32 2147483647, %v836
    %vm847 = vcmp.eq.f32.partialorder %v846, 8.507059e+37
    %v848 = vand.u32 %v836, 2147483648
    %v849 = vor.u32 1.1754944e-38, %v848
    %v850 = vsel %vm847, %v849, %v845
    %v851 = vmul.f32 1.0, %v850
    %v853 = vrot.slane %v807, 6
    %v855 = vadd.f32 %v103, %v853
    %v856 = vxor.u32 %v855, 2147483648
    %v857 = vmul.f32 %v856, 1.442695
    %v858 = vpow.pop %v857
    %v859 = vadd.f32 %v858, 1.0
    %v860 = vrcp.pop %v859
    %v861 = vmul.f32 %v859, %v860
    %v862 = vsub.f32 1.0, %v861
    %v863 = vmul.f32 %v860, %v862
    %v864 = vadd.f32 %v860, %v863
    %vm865 = vweird.f32 %v859
    %vm866 = vweird.f32 %v860
    %vm867 = vmor %vm865, %vm866
    %v868 = vsel %vm867, %v860, %v864
    %v869 = vand.u32 2147483647, %v859
    %vm870 = vcmp.eq.f32.partialorder %v869, 8.507059e+37
    %v871 = vand.u32 %v859, 2147483648
    %v872 = vor.u32 1.1754944e-38, %v871
    %v873 = vsel %vm870, %v872, %v868
    %v874 = vmul.f32 1.0, %v873
    %v876 = vrot.slane %v827, 6
    %v878 = vmul.f32 %v851, %v876
    %v879 = vadd.f32 %v126, %v878
    %v880 = vtanh.pop %v879
    %v881 = vsub.f32 1.0, %v874
    %v882 = vmul.f32 %v881, %v880
    %v883 = vrot.slane %v758, 6
    %v885 = vmul.f32 %v874, %v883
    %v886 = vadd.f32 %v882, %v885
    %vm887 = vcmp.eq.s32.totalorder %v141, 5
    %v888 = vsel %vm887, 1, 0
    %889 = vset.pattern.permute.xlu0 0
    %890 = vperm.xlu0 %889, %v888
    %v891 = vpop.permute.xlu0 %890
    %vm892 = vcmp.eq.s32.totalorder %v891, 1
    %v894 = vrot.slane %v886, 2
    %v896 = vsel %vm892, %v894, %v765
    %v897 = vsel %vm52, %v894, 0
    %899 = vmatpush.msra.mxu0 0.0
    %900 = vmatpush.msra.mxu0 0.0
    %901 = vmatpush.msra.mxu0 0.0
    %902 = vmatpush.msra.mxu0 0.0
    %903 = vmatpush.msra.mxu0 0.0
    %904 = vmatpush.msra.mxu0 0.0
    %905 = vmatpush.msra.mxu0 0.0
    %906 = vmatpush.msra.mxu0 0.0
    %907 = vmatpush.msra.mxu0 0.0
    %908 = vmatpush.msra.mxu0 0.0
    %909 = vmatpush.msra.mxu0 0.0
    %910 = vmatpush.msra.mxu0 0.0
    %911 = vmatpush.msra.mxu0 %v137
    %912 = vmatpush.msra.mxu0 %v134
    %913 = vmatpush.msra.mxu0 %v131
    %914 = vmatpush.msra.mxu0 %v128
    %915 = vmatmul.f32.gmra.mxu0 %v897
    %v916 = vpop.f32.mrf.mxu0
    %v917 = vadd.f32 0.0, %v916
    %918 = vdwg.mxu0
    %919 = vmatpush.msra.mxu0 0.0
    %920 = vmatpush.msra.mxu0 0.0
    %921 = vmatpush.msra.mxu0 0.0
    %922 = vmatpush.msra.mxu0 0.0
    %923 = vmatpush.msra.mxu0 0.0
    %924 = vmatpush.msra.mxu0 0.0
    %925 = vmatpush.msra.mxu0 0.0
    %926 = vmatpush.msra.mxu0 0.0
    %927 = vmatpush.msra.mxu0 0.0
    %928 = vmatpush.msra.mxu0 0.0
    %929 = vmatpush.msra.mxu0 0.0
    %930 = vmatpush.msra.mxu0 0.0
    %931 = vmatpush.msra.mxu0 %v138
    %932 = vmatpush.msra.mxu0 %v135
    %933 = vmatpush.msra.mxu0 %v132
    %934 = vmatpush.msra.mxu0 %v129
    %935 = vmatmul.f32.gmra.mxu0 %v897
    %v936 = vpop.f32.mrf.mxu0
    %v937 = vadd.f32 0.0, %v936
    %938 = vdwg.mxu0
    %939 = vmatpush.msra.mxu0 0.0
    %940 = vmatpush.msra.mxu0 0.0
    %941 = vmatpush.msra.mxu0 0.0
    %942 = vmatpush.msra.mxu0 0.0
    %943 = vmatpush.msra.mxu0 0.0
    %944 = vmatpush.msra.mxu0 0.0
    %945 = vmatpush.msra.mxu0 0.0
    %946 = vmatpush.msra.mxu0 0.0
    %947 = vmatpush.msra.mxu0 0.0
    %948 = vmatpush.msra.mxu0 0.0
    %949 = vmatpush.msra.mxu0 0.0
    %950 = vmatpush.msra.mxu0 0.0
    %951 = vmatpush.msra.mxu0 %v139
    %952 = vmatpush.msra.mxu0 %v136
    %953 = vmatpush.msra.mxu0 %v133
    %954 = vmatpush.msra.mxu0 %v130
    %955 = vmatmul.f32.gmra.mxu0 %v897
    %v956 = vpop.f32.mrf.mxu0
    %v957 = vadd.f32 0.0, %v956
    %958 = vdwg.mxu0
    %v960 = vrot.slane %v917, 4
    %v962 = vadd.f32 %v80, %v960
    %v963 = vxor.u32 %v962, 2147483648
    %v964 = vmul.f32 %v963, 1.442695
    %v965 = vpow.pop %v964
    %v966 = vadd.f32 %v965, 1.0
    %v967 = vrcp.pop %v966
    %v968 = vmul.f32 %v966, %v967
    %v969 = vsub.f32 1.0, %v968
    %v970 = vmul.f32 %v967, %v969
    %v971 = vadd.f32 %v967, %v970
    %vm972 = vweird.f32 %v966
    %vm973 = vweird.f32 %v967
    %vm974 = vmor %vm972, %vm973
    %v975 = vsel %vm974, %v967, %v971
    %v976 = vand.u32 2147483647, %v966
    %vm977 = vcmp.eq.f32.partialorder %v976, 8.507059e+37
    %v978 = vand.u32 %v966, 2147483648
    %v979 = vor.u32 1.1754944e-38, %v978
    %v980 = vsel %vm977, %v979, %v975
    %v981 = vmul.f32 1.0, %v980
    %v983 = vrot.slane %v937, 4
    %v985 = vadd.f32 %v103, %v983
    %v986 = vxor.u32 %v985, 2147483648
    %v987 = vmul.f32 %v986, 1.442695
    %v988 = vpow.pop %v987
    %v989 = vadd.f32 %v988, 1.0
    %v990 = vrcp.pop %v989
    %v991 = vmul.f32 %v989, %v990
    %v992 = vsub.f32 1.0, %v991
    %v993 = vmul.f32 %v990, %v992
    %v994 = vadd.f32 %v990, %v993
    %vm995 = vweird.f32 %v989
    %vm996 = vweird.f32 %v990
    %vm997 = vmor %vm995, %vm996
    %v998 = vsel %vm997, %v990, %v994
    %v999 = vand.u32 2147483647, %v989
    %vm1000 = vcmp.eq.f32.partialorder %v999, 8.507059e+37
    %v1001 = vand.u32 %v989, 2147483648
    %v1002 = vor.u32 1.1754944e-38, %v1001
    %v1003 = vsel %vm1000, %v1002, %v998
    %v1004 = vmul.f32 1.0, %v1003
    %v1006 = vrot.slane %v957, 4
    %v1008 = vmul.f32 %v981, %v1006
    %v1009 = vadd.f32 %v126, %v1008
    %v1010 = vtanh.pop %v1009
    %v1011 = vsub.f32 1.0, %v1004
    %v1012 = vmul.f32 %v1011, %v1010
    %v1013 = vrot.slane %v886, 6
    %v1015 = vmul.f32 %v1004, %v1013
    %v1016 = vadd.f32 %v1012, %v1015
    %vm1017 = vcmp.eq.s32.totalorder %v141, 6
    %v1018 = vsel %vm1017, 1, 0
    %1019 = vset.pattern.permute.xlu0 0
    %1020 = vperm.xlu0 %1019, %v1018
    %v1021 = vpop.permute.xlu0 %1020
    %vm1022 = vcmp.eq.s32.totalorder %v1021, 1
    %v1024 = vrot.slane %v1016, 4
    %v1026 = vsel %vm1022, %v1024, %v896
    %v1027 = vsel %vm52, %v1024, 0
    %1029 = vmatpush.msra.mxu0 0.0
    %1030 = vmatpush.msra.mxu0 0.0
    %1031 = vmatpush.msra.mxu0 0.0
    %1032 = vmatpush.msra.mxu0 0.0
    %1033 = vmatpush.msra.mxu0 0.0
    %1034 = vmatpush.msra.mxu0 0.0
    %1035 = vmatpush.msra.mxu0 0.0
    %1036 = vmatpush.msra.mxu0 0.0
    %1037 = vmatpush.msra.mxu0 0.0
    %1038 = vmatpush.msra.mxu0 0.0
    %1039 = vmatpush.msra.mxu0 0.0
    %1040 = vmatpush.msra.mxu0 0.0
    %1041 = vmatpush.msra.mxu0 %v137
    %1042 = vmatpush.msra.mxu0 %v134
    %1043 = vmatpush.msra.mxu0 %v131
    %1044 = vmatpush.msra.mxu0 %v128
    %1045 = vmatmul.f32.gmra.mxu0 %v1027
    %v1046 = vpop.f32.mrf.mxu0
    %v1047 = vadd.f32 0.0, %v1046
    %1048 = vdwg.mxu0
    %1049 = vmatpush.msra.mxu0 0.0
    %1050 = vmatpush.msra.mxu0 0.0
    %1051 = vmatpush.msra.mxu0 0.0
    %1052 = vmatpush.msra.mxu0 0.0
    %1053 = vmatpush.msra.mxu0 0.0
    %1054 = vmatpush.msra.mxu0 0.0
    %1055 = vmatpush.msra.mxu0 0.0
    %1056 = vmatpush.msra.mxu0 0.0
    %1057 = vmatpush.msra.mxu0 0.0
    %1058 = vmatpush.msra.mxu0 0.0
    %1059 = vmatpush.msra.mxu0 0.0
    %1060 = vmatpush.msra.mxu0 0.0
    %1061 = vmatpush.msra.mxu0 %v138
    %1062 = vmatpush.msra.mxu0 %v135
    %1063 = vmatpush.msra.mxu0 %v132
    %1064 = vmatpush.msra.mxu0 %v129
    %1065 = vmatmul.f32.gmra.mxu0 %v1027
    %v1066 = vpop.f32.mrf.mxu0
    %v1067 = vadd.f32 0.0, %v1066
    %1068 = vdwg.mxu0
    %1069 = vmatpush.msra.mxu0 0.0
    %1070 = vmatpush.msra.mxu0 0.0
    %1071 = vmatpush.msra.mxu0 0.0
    %1072 = vmatpush.msra.mxu0 0.0
    %1073 = vmatpush.msra.mxu0 0.0
    %1074 = vmatpush.msra.mxu0 0.0
    %1075 = vmatpush.msra.mxu0 0.0
    %1076 = vmatpush.msra.mxu0 0.0
    %1077 = vmatpush.msra.mxu0 0.0
    %1078 = vmatpush.msra.mxu0 0.0
    %1079 = vmatpush.msra.mxu0 0.0
    %1080 = vmatpush.msra.mxu0 0.0
    %1081 = vmatpush.msra.mxu0 %v139
    %1082 = vmatpush.msra.mxu0 %v136
    %1083 = vmatpush.msra.mxu0 %v133
    %1084 = vmatpush.msra.mxu0 %v130
    %1085 = vmatmul.f32.gmra.mxu0 %v1027
    %v1086 = vpop.f32.mrf.mxu0
    %v1087 = vadd.f32 0.0, %v1086
    %1088 = vdwg.mxu0
    %v1090 = vrot.slane %v1047, 2
    %v1092 = vadd.f32 %v80, %v1090
    %v1093 = vxor.u32 %v1092, 2147483648
    %v1094 = vmul.f32 %v1093, 1.442695
    %v1095 = vpow.pop %v1094
    %v1096 = vadd.f32 %v1095, 1.0
    %v1097 = vrcp.pop %v1096
    %v1098 = vmul.f32 %v1096, %v1097
    %v1099 = vsub.f32 1.0, %v1098
    %v1100 = vmul.f32 %v1097, %v1099
    %v1101 = vadd.f32 %v1097, %v1100
    %vm1102 = vweird.f32 %v1096
    %vm1103 = vweird.f32 %v1097
    %vm1104 = vmor %vm1102, %vm1103
    %v1105 = vsel %vm1104, %v1097, %v1101
    %v1106 = vand.u32 2147483647, %v1096
    %vm1107 = vcmp.eq.f32.partialorder %v1106, 8.507059e+37
    %v1108 = vand.u32 %v1096, 2147483648
    %v1109 = vor.u32 1.1754944e-38, %v1108
    %v1110 = vsel %vm1107, %v1109, %v1105
    %v1111 = vmul.f32 1.0, %v1110
    %v1113 = vrot.slane %v1067, 2
    %v1115 = vadd.f32 %v103, %v1113
    %v1116 = vxor.u32 %v1115, 2147483648
    %v1117 = vmul.f32 %v1116, 1.442695
    %v1118 = vpow.pop %v1117
    %v1119 = vadd.f32 %v1118, 1.0
    %v1120 = vrcp.pop %v1119
    %v1121 = vmul.f32 %v1119, %v1120
    %v1122 = vsub.f32 1.0, %v1121
    %v1123 = vmul.f32 %v1120, %v1122
    %v1124 = vadd.f32 %v1120, %v1123
    %vm1125 = vweird.f32 %v1119
    %vm1126 = vweird.f32 %v1120
    %vm1127 = vmor %vm1125, %vm1126
    %v1128 = vsel %vm1127, %v1120, %v1124
    %v1129 = vand.u32 2147483647, %v1119
    %vm1130 = vcmp.eq.f32.partialorder %v1129, 8.507059e+37
    %v1131 = vand.u32 %v1119, 2147483648
    %v1132 = vor.u32 1.1754944e-38, %v1131
    %v1133 = vsel %vm1130, %v1132, %v1128
    %v1134 = vmul.f32 1.0, %v1133
    %v1136 = vrot.slane %v1087, 2
    %v1138 = vmul.f32 %v1111, %v1136
    %v1139 = vadd.f32 %v126, %v1138
    %v1140 = vtanh.pop %v1139
    %v1141 = vsub.f32 1.0, %v1134
    %v1142 = vmul.f32 %v1141, %v1140
    %v1143 = vrot.slane %v1016, 6
    %v1145 = vmul.f32 %v1134, %v1143
    %v1146 = vadd.f32 %v1142, %v1145
    %vm1147 = vcmp.eq.s32.totalorder %v141, 7
    %v1148 = vsel %vm1147, 1, 0
    %1149 = vset.pattern.permute.xlu0 0
    %1150 = vperm.xlu0 %1149, %v1148
    %v1151 = vpop.permute.xlu0 %1150
    %vm1152 = vcmp.eq.s32.totalorder %v1151, 1
    %v1154 = vrot.slane %v1146, 6
    %v1156 = vsel %vm1152, %v1154, %v1026
    %v1157 = vld [vmem:[%s8] sm:$0xff]
    %v1158 = vld [vmem:[%s8 + $0x8] sm:$0xff]
    %v1159 = vld [vmem:[%s8 + $0x10] sm:$0xff]
    %v1160 = vld [vmem:[%s8 + $0x18] sm:$0xff]
    %v1161 = vld [vmem:[%s9] sm:$0x1]
    %v1163 = vperm.slane %v1161, 0
    %v1166 = vsel %vm52, %v1156, 0
    %1168 = vmatpush.msra.mxu0 0.0
    %1169 = vmatpush.msra.mxu0 0.0
    %1170 = vmatpush.msra.mxu0 0.0
    %1171 = vmatpush.msra.mxu0 0.0
    %1172 = vmatpush.msra.mxu0 0.0
    %1173 = vmatpush.msra.mxu0 0.0
    %1174 = vmatpush.msra.mxu0 0.0
    %1175 = vmatpush.msra.mxu0 0.0
    %1176 = vmatpush.msra.mxu0 0.0
    %1177 = vmatpush.msra.mxu0 0.0
    %1178 = vmatpush.msra.mxu0 0.0
    %1179 = vmatpush.msra.mxu0 0.0
    %1180 = vmatpush.msra.mxu0 %v1160
    %1181 = vmatpush.msra.mxu0 %v1159
    %1182 = vmatpush.msra.mxu0 %v1158
    %1183 = vmatpush.msra.mxu0 %v1157
    %1184 = vmatmul.f32.gmra.mxu0 %v1166
    %v1185 = vpop.f32.mrf.mxu0
    %v1186 = vadd.f32 %v1163, %v1185
    %1187 = vdwg.mxu0
    %v1188 = vmax.f32 %v1186, 0.0
    %v1189 = vmul.f32 %v1188, %v1188
    %vm1190 = vcmask 254976
    %v1191 = vsel %vm1190, %v1189, 0.0
    %1192 = vadd.xlane.f32.xlu0 %v1191
    %v1193 = vpop.xlane.xlu0 %1192
    %v1194 = vmax.f32 %v1193, 1e-24
    %v1195 = vrsqrt.pop %v1194
    %v1196 = vmul.f32 %v1195, %v1194
    %v1197 = vmul.f32 %v1196, %v1195
    %v1198 = vmul.f32 0.5, %v1197
    %v1199 = vsub.f32 1.5, %v1198
    %v1200 = vmul.f32 %v1195, %v1199
    %vm1201 = vweird.f32 %v1194
    %vm1202 = vweird.f32 %v1195
    %vm1203 = vmor %vm1201, %vm1202
    %v1204 = vsel %vm1203, %v1195, %v1200
    %v1205 = vmul.f32 %v1188, %v1204
    %v1206 = vld [vmem:[%s1] sm:$0xff]
    %v1207 = vld [vmem:[%s1 + $0x8] sm:$0xff]
    %v1208 = vld [vmem:[%s4] sm:$0xff]
    %v1209 = vld [vmem:[%s4 + $0x8] sm:$0xff]
    %v1210 = vld [vmem:[%s4 + $0x10] sm:$0xff]
    %v1211 = vld [vmem:[%s4 + $0x18] sm:$0xff]
    %v1213 = vsel %vm52, %v1206, 0
    %v1216 = vsel %vm52, %v1207, 0
    %1218 = vmatpush.msra.mxu0 0.0
    %1219 = vmatpush.msra.mxu0 0.0
    %1220 = vmatpush.msra.mxu0 0.0
    %1221 = vmatpush.msra.mxu0 0.0
    %1222 = vmatpush.msra.mxu0 0.0
    %1223 = vmatpush.msra.mxu0 0.0
    %1224 = vmatpush.msra.mxu0 0.0
    %1225 = vmatpush.msra.mxu0 0.0
    %1226 = vmatpush.msra.mxu0 0.0
    %1227 = vmatpush.msra.mxu0 0.0
    %1228 = vmatpush.msra.mxu0 0.0
    %1229 = vmatpush.msra.mxu0 0.0
    %1230 = vmatpush.msra.mxu0 %v1211
    %1231 = vmatpush.msra.mxu0 %v1210
    %1232 = vmatpush.msra.mxu0 %v1209
    %1233 = vmatpush.msra.mxu0 %v1208
    %1234 = vmatmul.f32.gmra.mxu0 %v1213
    %v1235 = vpop.f32.mrf.mxu0
    %v1236 = vadd.f32 0.0, %v1235
    %1237 = vmatmul.f32.gmra.mxu0 %v1216
    %v1238 = vpop.f32.mrf.mxu0
    %v1239 = vadd.f32 0.0, %v1238
    %1240 = vdwg.mxu0
    %v1241 = vmul.f32 %v1236, 10.0
    %v1242 = vmul.f32 %v1239, 10.0
    %vm1243 = vcmask 31744
    %v1244 = vsel %vm1243, %v1241, -inf
    %1245 = vmax.xlane.f32.xlu0 %v1244
    %v1246 = vpop.xlane.xlu0 %1245
    %v1247 = vsel %vm1243, %v1242, -inf
    %1248 = vmax.xlane.f32.xlu0 %v1247
    %v1249 = vpop.xlane.xlu0 %1248
    %v1250 = vsub.f32 %v1241, %v1246
    %v1251 = vsub.f32 %v1242, %v1249
    %v1252 = vmul.f32 %v1250, 1.442695
    %v1253 = vpow.pop %v1252
    %v1254 = vmul.f32 %v1251, 1.442695
    %v1255 = vpow.pop %v1254
    %v1256 = vsel %vm1243, %v1253, 0.0
    %1257 = vadd.xlane.f32.xlu0 %v1256
    %v1258 = vpop.xlane.xlu0 %1257
    %v1259 = vsel %vm1243, %v1255, 0.0
    %1260 = vadd.xlane.f32.xlu0 %v1259
    %v1261 = vpop.xlane.xlu0 %1260
    %v1262 = vrcp.pop %v1258
    %v1263 = vmul.f32 %v1258, %v1262
    %v1264 = vsub.f32 1.0, %v1263
    %v1265 = vmul.f32 %v1262, %v1264
    %v1266 = vadd.f32 %v1262, %v1265
    %vm1267 = vweird.f32 %v1258
    %vm1268 = vweird.f32 %v1262
    %vm1269 = vmor %vm1267, %vm1268
    %v1270 = vsel %vm1269, %v1262, %v1266
    %v1271 = vand.u32 2147483647, %v1258
    %vm1272 = vcmp.eq.f32.partialorder %v1271, 8.507059e+37
    %v1273 = vand.u32 %v1258, 2147483648
    %v1274 = vor.u32 1.1754944e-38, %v1273
    %v1275 = vsel %vm1272, %v1274, %v1270
    %v1276 = vmul.f32 %v1253, %v1275
    %v1277 = vrcp.pop %v1261
    %v1278 = vmul.f32 %v1261, %v1277
    %v1279 = vsub.f32 1.0, %v1278
    %v1280 = vmul.f32 %v1277, %v1279
    %v1281 = vadd.f32 %v1277, %v1280
    %vm1282 = vweird.f32 %v1261
    %vm1283 = vweird.f32 %v1277
    %vm1284 = vmor %vm1282, %vm1283
    %v1285 = vsel %vm1284, %v1277, %v1281
    %v1286 = vand.u32 2147483647, %v1261
    %vm1287 = vcmp.eq.f32.partialorder %v1286, 8.507059e+37
    %v1288 = vand.u32 %v1261, 2147483648
    %v1289 = vor.u32 1.1754944e-38, %v1288
    %v1290 = vsel %vm1287, %v1289, %v1285
    %v1291 = vmul.f32 %v1255, %v1290
    %v1292 = vlaneseq
    %v1293 = vshrl.u32 %v1292, 7
    %v1294 = vadd.s32 %v1293, 8
    %vm1295 = vcmp.lt.s32.totalorder %v1293, 0
    %v1296 = vsub.s32 0, %v1293
    %v1297 = vsel %vm1295, %v1296, %v1293
    %v1298 = vshrl.u32 %v1297, 3
    %v1299 = vand.u32 %v1297, 7
    %v1300 = vsub.s32 0, %v1299
    %v1301 = vsel %vm1295, %v1300, %v1299
    %vm1302 = vcmp.lt.s32.totalorder %v1294, 0
    %v1303 = vsub.s32 0, %v1294
    %v1304 = vsel %vm1302, %v1303, %v1294
    %v1305 = vshrl.u32 %v1304, 3
    %v1306 = vand.u32 %v1304, 7
    %v1307 = vsub.s32 0, %v1306
    %v1308 = vsel %vm1302, %v1307, %v1306
    %vm1309 = vcmp.ne.s32.totalorder %v1301, 0
    %vm1310 = vcmp.ne.s32.totalorder %v1308, 0
    %vm1311 = vcmp.lt.s32.totalorder %v1301, 0
    %vm1312 = vcmp.lt.s32.totalorder %v1308, 0
    %vm1313 = vmand %vm1311, %vm1309
    %vm1314 = vmand %vm1312, %vm1310
    %v1315 = vadd.s32 %v1301, 8
    %v1316 = vadd.s32 %v1308, 8
    %v1317 = vsel %vm1313, %v1315, %v1301
    %v1318 = vsel %vm1314, %v1316, %v1308
    %v1319 = vld [vmem:[%s3] sm:$0xff]
    %v1320 = vld [vmem:[%s3 + $0x8] sm:$0xff]
    %vm1321 = vcmp.lt.s32.totalorder %v1317, %v1319
    %vm1322 = vcmp.lt.s32.totalorder %v1318, %v1320
    %v1323 = vsel %vm1321, 1, 0
    %v1324 = vsel %vm1322, 1, 0
    %v1325 = vcvt.s32.f32 %v1323
    %v1326 = vcvt.s32.f32 %v1324
    %1328 = vset.pattern.permute.xlu0 0
    %1329 = vperm.xlu0 %1328, %v1325
    %v1330 = vpop.permute.xlu0 %1329
    %1333 = vset.pattern.permute.xlu0 0
    %1334 = vperm.xlu0 %1333, %v1326
    %v1335 = vpop.permute.xlu0 %1334
    %v1337 = vmul.f32 %v1276, %v1330
    %v1338 = vmul.f32 %v1291, %v1335
    %v1339 = vld [vmem:[%s5] sm:$0xf]
    %1340 = vxpose.xlu0.b32.start [1/16] %v1337, 128
    %1341 = vxpose.xlu0.b32.cont [2/16] 0.0, 128
    %1342 = vxpose.xlu0.b32.cont [3/16] 0.0, 128
    %1343 = vxpose.xlu0.b32.cont [4/16] 0.0, 128
    %1344 = vxpose.xlu0.b32.cont [5/16] 0.0, 128
    %1345 = vxpose.xlu0.b32.cont [6/16] 0.0, 128
    %1346 = vxpose.xlu0.b32.cont [7/16] 0.0, 128
    %1347 = vxpose.xlu0.b32.cont [8/16] 0.0, 128
    %1348 = vxpose.xlu0.b32.cont [9/16] 0.0, 128
    %1349 = vxpose.xlu0.b32.cont [10/16] 0.0, 128
    %1350 = vxpose.xlu0.b32.cont [11/16] 0.0, 128
    %1351 = vxpose.xlu0.b32.cont [12/16] 0.0, 128
    %1352 = vxpose.xlu0.b32.cont [13/16] 0.0, 128
    %1353 = vxpose.xlu0.b32.cont [14/16] 0.0, 128
    %1354 = vxpose.xlu0.b32.cont [15/16] 0.0, 128
    %1355 = vxpose.xlu0.b32.end [16/16] 0.0, 128
    %v1356 = vpop.trf.xlu0
    %v1357 = vpop.trf.xlu0
    %v1358 = vpop.trf.xlu0
    %v1359 = vpop.trf.xlu0
    %v1360 = vpop.trf.xlu0
    %v1361 = vpop.trf.xlu0
    %v1362 = vpop.trf.xlu0
    %v1363 = vpop.trf.xlu0
    %v1364 = vpop.trf.xlu0
    %v1365 = vpop.trf.xlu0
    %v1366 = vpop.trf.xlu0
    %v1367 = vpop.trf.xlu0
    %v1368 = vpop.trf.xlu0
    %v1369 = vpop.trf.xlu0
    %v1370 = vpop.trf.xlu0
    %v1371 = vpop.trf.xlu0
    %vm1372 = vcmask 64512
    %v1374 = vsel %vm1372, %v1356, 0
    %1376 = vmatpush.msra.mxu0 0.0
    %1377 = vmatpush.msra.mxu0 0.0
    %1378 = vmatpush.msra.mxu0 0.0
    %1379 = vmatpush.msra.mxu0 0.0
    %1380 = vmatpush.msra.mxu0 0.0
    %1381 = vmatpush.msra.mxu0 0.0
    %1382 = vmatpush.msra.mxu0 0.0
    %1383 = vmatpush.msra.mxu0 0.0
    %1384 = vmatpush.msra.mxu0 0.0
    %1385 = vmatpush.msra.mxu0 0.0
    %1386 = vmatpush.msra.mxu0 0.0
    %1387 = vmatpush.msra.mxu0 0.0
    %1388 = vmatpush.msra.mxu0 0.0
    %1389 = vmatpush.msra.mxu0 0.0
    %1390 = vmatpush.msra.mxu0 0.0
    %1391 = vmatpush.msra.mxu0 %v1206
    %1392 = vmatmul.f32.gmra.mxu0 %v1374
    %v1393 = vpop.f32.mrf.mxu0
    %v1394 = vadd.f32 0.0, %v1393
    %1395 = vdwg.mxu0
    %v1396 = vmul.f32 %v1394, %v1394
    %vm1397 = vcmask 257024
    %v1398 = vsel %vm1397, %v1396, 0.0
    %1399 = vadd.xlane.f32.xlu0 %v1398
    %v1400 = vpop.xlane.xlu0 %1399
    %v1401 = vmax.f32 %v1400, 1e-24
    %v1402 = vrsqrt.pop %v1401
    %v1403 = vmul.f32 %v1402, %v1401
    %v1404 = vmul.f32 %v1403, %v1402
    %v1405 = vmul.f32 0.5, %v1404
    %v1406 = vsub.f32 1.5, %v1405
    %v1407 = vmul.f32 %v1402, %v1406
    %vm1408 = vweird.f32 %v1401
    %vm1409 = vweird.f32 %v1402
    %vm1410 = vmor %vm1408, %vm1409
    %v1411 = vsel %vm1410, %v1402, %v1407
    %v1412 = vmul.f32 %v1394, %v1411
    %v1413 = vsel %vm1243, %v1337, 0.0
    %v1414 = vrot.slane %v1413, 4
    %v1415 = vadd.f32 %v1413, %v1414
    %v1416 = vrot.slane %v1415, 2
    %v1417 = vadd.f32 %v1415, %v1416
    %v1418 = vrot.slane %v1417, 1
    %v1419 = vadd.f32 %v1417, %v1418
    %v1420 = vlaneseq
    %v1421 = vshrl.u32 %v1420, 7
    %1423 = vset.pattern.permute.xlu0 %v1421
    %1424 = vperm.xlu0 %1423, %v1419
    %v1425 = vpop.permute.xlu0 %1424
    %vm1426 = vcmp.gt.f32.partialorder %v1425, 0.0
    %v1427 = vsel %vm1426, 1, 0
    %vm1428 = vcmp.eq.s32.totalorder %v1427, 1
    %v1429 = vsel %vm1428, %v1412, %v1339
    %v1431 = vrot.slane %v1429, 1
    %1432 = vrot.lane.b32.xlu0 %v1431, 32
    %v1433 = vpop.permute.xlu0 %1432
    %v1435 = vrot.slane %v1429, 2
    %1436 = vrot.lane.b32.xlu0 %v1435, 64
    %v1437 = vpop.permute.xlu0 %1436
    %v1439 = vrot.slane %v1429, 3
    %1440 = vrot.lane.b32.xlu0 %v1439, 96
    %v1441 = vpop.permute.xlu0 %1440
    %v1443 = vsel %vm52, %v1429, %v1433
    %vm1444 = vcmask 523264
    %v1445 = vsel %vm1444, %v1443, %v1437
    %vm1446 = vcmask 785408
    %v1447 = vsel %vm1446, %v1445, %v1441
    %1448 = vxpose.xlu0.b32.start [1/16] %v1338, 128
    %1449 = vxpose.xlu0.b32.cont [2/16] 0.0, 128
    %1450 = vxpose.xlu0.b32.cont [3/16] 0.0, 128
    %1451 = vxpose.xlu0.b32.cont [4/16] 0.0, 128
    %1452 = vxpose.xlu0.b32.cont [5/16] 0.0, 128
    %1453 = vxpose.xlu0.b32.cont [6/16] 0.0, 128
    %1454 = vxpose.xlu0.b32.cont [7/16] 0.0, 128
    %1455 = vxpose.xlu0.b32.cont [8/16] 0.0, 128
    %1456 = vxpose.xlu0.b32.cont [9/16] 0.0, 128
    %1457 = vxpose.xlu0.b32.cont [10/16] 0.0, 128
    %1458 = vxpose.xlu0.b32.cont [11/16] 0.0, 128
    %1459 = vxpose.xlu0.b32.cont [12/16] 0.0, 128
    %1460 = vxpose.xlu0.b32.cont [13/16] 0.0, 128
    %1461 = vxpose.xlu0.b32.cont [14/16] 0.0, 128
    %1462 = vxpose.xlu0.b32.cont [15/16] 0.0, 128
    %1463 = vxpose.xlu0.b32.end [16/16] 0.0, 128
    %v1464 = vpop.trf.xlu0
    %v1465 = vpop.trf.xlu0
    %v1466 = vpop.trf.xlu0
    %v1467 = vpop.trf.xlu0
    %v1468 = vpop.trf.xlu0
    %v1469 = vpop.trf.xlu0
    %v1470 = vpop.trf.xlu0
    %v1471 = vpop.trf.xlu0
    %v1472 = vpop.trf.xlu0
    %v1473 = vpop.trf.xlu0
    %v1474 = vpop.trf.xlu0
    %v1475 = vpop.trf.xlu0
    %v1476 = vpop.trf.xlu0
    %v1477 = vpop.trf.xlu0
    %v1478 = vpop.trf.xlu0
    %v1479 = vpop.trf.xlu0
    %v1481 = vsel %vm1372, %v1464, 0
    %1483 = vmatpush.msra.mxu0 0.0
    %1484 = vmatpush.msra.mxu0 0.0
    %1485 = vmatpush.msra.mxu0 0.0
    %1486 = vmatpush.msra.mxu0 0.0
    %1487 = vmatpush.msra.mxu0 0.0
    %1488 = vmatpush.msra.mxu0 0.0
    %1489 = vmatpush.msra.mxu0 0.0
    %1490 = vmatpush.msra.mxu0 0.0
    %1491 = vmatpush.msra.mxu0 0.0
    %1492 = vmatpush.msra.mxu0 0.0
    %1493 = vmatpush.msra.mxu0 0.0
    %1494 = vmatpush.msra.mxu0 0.0
    %1495 = vmatpush.msra.mxu0 0.0
    %1496 = vmatpush.msra.mxu0 0.0
    %1497 = vmatpush.msra.mxu0 0.0
    %1498 = vmatpush.msra.mxu0 %v1207
    %1499 = vmatmul.f32.gmra.mxu0 %v1481
    %v1500 = vpop.f32.mrf.mxu0
    %v1501 = vadd.f32 0.0, %v1500
    %1502 = vdwg.mxu0
    %v1503 = vmul.f32 %v1501, %v1501
    %v1504 = vsel %vm1397, %v1503, 0.0
    %1505 = vadd.xlane.f32.xlu0 %v1504
    %v1506 = vpop.xlane.xlu0 %1505
    %v1507 = vmax.f32 %v1506, 1e-24
    %v1508 = vrsqrt.pop %v1507
    %v1509 = vmul.f32 %v1508, %v1507
    %v1510 = vmul.f32 %v1509, %v1508
    %v1511 = vmul.f32 0.5, %v1510
    %v1512 = vsub.f32 1.5, %v1511
    %v1513 = vmul.f32 %v1508, %v1512
    %vm1514 = vweird.f32 %v1507
    %vm1515 = vweird.f32 %v1508
    %vm1516 = vmor %vm1514, %vm1515
    %v1517 = vsel %vm1516, %v1508, %v1513
    %v1518 = vmul.f32 %v1501, %v1517
    %v1519 = vsel %vm1243, %v1338, 0.0
    %v1520 = vrot.slane %v1519, 4
    %v1521 = vadd.f32 %v1519, %v1520
    %v1522 = vrot.slane %v1521, 2
    %v1523 = vadd.f32 %v1521, %v1522
    %v1524 = vrot.slane %v1523, 1
    %v1525 = vadd.f32 %v1523, %v1524
    %v1526 = vlaneseq
    %v1527 = vshrl.u32 %v1526, 7
    %1529 = vset.pattern.permute.xlu0 %v1527
    %1530 = vperm.xlu0 %1529, %v1525
    %v1531 = vpop.permute.xlu0 %1530
    %vm1532 = vcmp.gt.f32.partialorder %v1531, 0.0
    %v1533 = vsel %vm1532, 1, 0
    %vm1534 = vcmp.eq.s32.totalorder %v1533, 1
    %v1535 = vsel %vm1534, %v1518, %v1339
    %v1537 = vrot.slane %v1535, 1
    %1538 = vrot.lane.b32.xlu0 %v1537, 32
    %v1539 = vpop.permute.xlu0 %1538
    %v1541 = vrot.slane %v1535, 2
    %1542 = vrot.lane.b32.xlu0 %v1541, 64
    %v1543 = vpop.permute.xlu0 %1542
    %v1545 = vrot.slane %v1535, 3
    %1546 = vrot.lane.b32.xlu0 %v1545, 96
    %v1547 = vpop.permute.xlu0 %1546
    %v1549 = vsel %vm52, %v1535, %v1539
    %v1550 = vsel %vm1444, %v1549, %v1543
    %v1551 = vsel %vm1446, %v1550, %v1547
    %v1553 = vrot.slane %v1551, 7
    %vm1555 = vcmask 1040384
    %v1556 = vsel %vm1555, %v1447, %v1553
    %1557 = vst [vmem:[%s10] sm:$0x3] %v1556
    %1559 = vrot.lane.b32.xlu0 %v1205, 32
    %v1560 = vpop.permute.xlu0 %1559
    %1562 = vrot.lane.b32.xlu0 %v1205, 64
    %v1563 = vpop.permute.xlu0 %1562
    %1565 = vrot.lane.b32.xlu0 %v1205, 96
    %v1566 = vpop.permute.xlu0 %1565
    %v1568 = vsel %vm52, %v1205, %v1560
    %v1569 = vsel %vm1444, %v1568, %v1563
    %v1570 = vsel %vm1446, %v1569, %v1566
    %v1571 = vmul.f32 %v1556, %v1570
    %v1572 = vsel %vm1190, %v1571, 0.0
    %1573 = vadd.xlane.f32.xlu0 %v1572
    %v1574 = vpop.xlane.xlu0 %1573
    %1576 = vrot.lane.b32.xlu0 %v1571, 96
    %v1577 = vpop.permute.xlu0 %1576
    %v1579 = vsel %vm1190, %v1577, 0.0
    %1580 = vadd.xlane.f32.xlu0 %v1579
    %v1581 = vpop.xlane.xlu0 %1580
    %1582 = vrot.lane.b32.xlu0 %v1571, 64
    %v1583 = vpop.permute.xlu0 %1582
    %v1585 = vsel %vm1190, %v1583, 0.0
    %1586 = vadd.xlane.f32.xlu0 %v1585
    %v1587 = vpop.xlane.xlu0 %1586
    %1588 = vrot.lane.b32.xlu0 %v1571, 32
    %v1589 = vpop.permute.xlu0 %1588
    %v1591 = vsel %vm1190, %v1589, 0.0
    %1592 = vadd.xlane.f32.xlu0 %v1591
    %v1593 = vpop.xlane.xlu0 %1592
    %vm1594 = vcmask 7168
    %v1595 = vsel %vm1594, %v1574, %v1581
    %vm1596 = vcmask 15360
    %v1597 = vsel %vm1596, %v1595, %v1587
    %vm1598 = vcmask 23552
    %v1599 = vsel %vm1598, %v1597, %v1593
    %v1600 = vmul.f32 %v1599, 10.0
    %vm1601 = vcmask 25600
    %v1602 = vsel %vm1601, %v1600, -inf
    %1603 = vmax.xlane.f32.xlu0 %v1602
    %v1604 = vpop.xlane.xlu0 %1603
    %v1605 = vsub.f32 %v1600, %v1604
    %v1606 = vmul.f32 %v1605, 1.442695
    %v1607 = vpow.pop %v1606
    %v1608 = vsel %vm1601, %v1607, 0.0
    %1609 = vadd.xlane.f32.xlu0 %v1608
    %v1610 = vpop.xlane.xlu0 %1609
    %v1611 = vrcp.pop %v1610
    %v1612 = vmul.f32 %v1610, %v1611
    %v1613 = vsub.f32 1.0, %v1612
    %v1614 = vmul.f32 %v1611, %v1613
    %v1615 = vadd.f32 %v1611, %v1614
    %vm1616 = vweird.f32 %v1610
    %vm1617 = vweird.f32 %v1611
    %vm1618 = vmor %vm1616, %vm1617
    %v1619 = vsel %vm1618, %v1611, %v1615
    %v1620 = vand.u32 2147483647, %v1610
    %vm1621 = vcmp.eq.f32.partialorder %v1620, 8.507059e+37
    %v1622 = vand.u32 %v1610, 2147483648
    %v1623 = vor.u32 1.1754944e-38, %v1622
    %v1624 = vsel %vm1621, %v1623, %v1619
    %v1625 = vmul.f32 %v1607, %v1624
    %1626 = vst.msk [vmem:[#allocation2] sm:$0x3] %vm1601, %v1625
    // Predicated region
    $region42: #{devcl_forward.1} parent=1 // pred_check
      _
    $region43: #{devcl_forward.1} parent=1 // pred_check_branch
      %1628 = sbr.rel (0) target = $region45
    $region44: #{devcl_forward.1} parent=1 // pred_region
      _
    $region45: #{devcl_forward.1} parent=1 // pred_fallthru
      _
    // Predicated region
    $region46: #{devcl_forward.1} parent=1 // pred_check
      _
    $region47: #{devcl_forward.1} parent=1 // pred_check_branch
      %1630 = sbr.rel (0) target = $region49
    $region48: #{devcl_forward.1} parent=1 // pred_region
      %1632 = vsyncadd [#allocation3], 0
      %s1634 = sshll.u32 [#allocation2], 4
      %s1635 = int_to_ptr.vmem [resolvable:$true] %s1634
      %s1636 = sshll.u32 %s11, 4
      %s1637 = int_to_ptr.hbm [resolvable:$true] %s1636
      %1639 = dma.vmem_to_hbm [thread:$0]  %s1635, 32, %s1637, [#allocation3]
    $region49: #{devcl_forward.1} parent=1 // pred_fallthru
      _
    // Predicated region
    $region50: #{devcl_forward.1} parent=1 // pred_check
      _
    $region51: #{devcl_forward.1} parent=1 // pred_check_branch
      %1641 = sbr.rel (0) target = $region53
    $region52: #{devcl_forward.1} parent=1 // pred_region
      _
    $region53: #{devcl_forward.1} parent=1 // pred_fallthru
      _
    // Predicated region
    $region54: #{devcl_forward.1} parent=1 // pred_check
      _
    $region55: #{devcl_forward.1} parent=1 // pred_check_branch
      %1643 = sbr.rel (0) target = $region57
    $region56: #{devcl_forward.1} parent=1 // pred_region
      %1645 = dma.done [#allocation3], 32
    $region57: #{devcl_forward.1} parent=1 // pred_fallthru
      _
    %1646 = vsyncpa [#allocation3], 1

</llo_original>
